<compile_context>
chip_gen: v7x
topology: tpu7x:2x2x1
jax: 0.10.0
libtpu: 0.0.40
codegen_flags: <defaults>
</compile_context>

<pallas_src>
import functools

import jax
import jax.numpy as jnp
from jax import lax
from jax.experimental import pallas as pl
from jax.experimental.pallas import tpu as pltpu


# ----------------------------------------------------------------------------
# Fused Pallas kernel: conv1+leaky -> conv2+BN+leaky -> conv3
# ----------------------------------------------------------------------------
def _fused_kernel(p1d_ref, w1_ref, w2_ref, w3_ref, gamma_ref, beta_ref,
                  out_ref, h1_ref, *, n, eps=1e-5, slope=0.2):
    # p1d_ref   : [8, N*16, 64]   bf16  packed layer-1 patches: row (j, n*16+opos)
    #                                   = [patch(kpos=2j) ; patch(kpos=2j+1)]
    # w1_ref    : [64, 128]       bf16  block-diagonal layer-1 weight (2x [32,64])
    # w2_ref    : [1024, 128]     bf16  layer-2 weight, rows = (kpos, cin)
    # w3_ref    : [16, 128]       f32   layer-3 weight, rows = 4x4 spatial position
    # gamma/beta: [1, 128]        f32   BatchNorm affine parameters
    # out_ref   : [N, 128]        f32   per-sample logit broadcast across lanes
    # h1_ref    : [N*16, 1024]    bf16  VMEM scratch: layer-2 im2col of layer-1 acts

    # ---- Layer 1: 8 chunked GEMMs + LeakyReLU, bf16 straight into h1_ref ----
    # Each chunk is [N*16, 64] x [64, 128]; the 128-lane output packs the 64
    # channels of two layer-2 kernel offsets.  Column slice stores are
    # 128-lane-aligned -> unmasked, no relayout, tiny f32 live range per chunk.
    for j in range(8):                                         # static unroll
        hj = jnp.dot(p1d_ref[j], w1_ref[...],
                     preferred_element_type=jnp.float32)       # [N*16, 128] f32
        hj = jnp.maximum(hj, slope * hj)                       # LeakyReLU(0.2)
        h1_ref[:, 128 * j:128 * (j + 1)] = hj.astype(jnp.bfloat16)

    # ---- Layer 2: ONE lane-dense MXU matmul, K = 1024 -----------------------
    acc = jnp.dot(h1_ref[...], w2_ref[...],
                  preferred_element_type=jnp.float32)          # [N*16, 128] f32

    # ---- BatchNorm2d (training-mode batch stats), one-pass sum / sumsq ------
    inv_cnt = 1.0 / float(n * 16)
    s = jnp.sum(acc, axis=0, keepdims=True)                    # [1, 128]
    ss = jnp.sum(acc * acc, axis=0, keepdims=True)             # [1, 128]
    mean = s * inv_cnt
    var = ss * inv_cnt - mean * mean
    y2 = (acc - mean) * (gamma_ref[...] * lax.rsqrt(var + eps)) + beta_ref[...]
    y2 = jnp.maximum(y2, slope * y2)                           # LeakyReLU(0.2)

    # ---- Layer 3 (Conv 128->1, k=4 on the 4x4 map) as VPU multiply + reduce -
    prod = y2.reshape(n, 16, 128) * w3_ref[...]                # [N, 16, 128]
    t = jnp.sum(jnp.sum(prod, axis=2, keepdims=True), axis=1)  # [N, 1]
    out_ref[...] = jnp.broadcast_to(t, (n, 128))               # lane-dense store


# ----------------------------------------------------------------------------
# Host glue: packed, duplicated im2col of the tiny 2-channel input (one-time)
# ----------------------------------------------------------------------------
def _layer1_patches_packed(x):
    """x: [N, 2, 16, 16] -> packed layer-1 patches [8, N*16, 64].

    Row (j, n*16 + opos) holds the concatenation of the two layer-1 im2col
    patches that produce the h1 pixels read by layer-2 output position
    opos = oh*4+ow at kernel offsets kpos = 2j and 2j+1 (kpos = kh2*4+kw2),
    with an all-zero 32-wide half wherever layer-2's zero padding falls
    (conv has no bias and LeakyReLU(0)=0, so zero patches reproduce padding).
    Patch columns are ordered (cin, kh1, kw1) to match the OIHW weight flatten.
    """
    N = x.shape[0]
    xpad = jnp.pad(x, ((0, 0), (0, 0), (1, 1), (1, 1)))           # [N,2,18,18]
    cols = [xpad[:, :, a:a + 16:2, b:b + 16:2]                    # [N,2,8,8]
            for a in range(4) for b in range(4)]
    p = jnp.stack(cols, axis=2)                                   # [N,2,16,8,8]
    p = p.transpose(0, 3, 4, 1, 2).reshape(N, 8, 8, 32)           # per-h1-pixel patches
    pp = jnp.pad(p, ((0, 0), (1, 1), (1, 1), (0, 0)))             # [N,10,10,32]
    blocks = [pp[:, a:a + 8:2, b:b + 8:2, :]                      # [N,4,4,32], idx = kpos
              for a in range(4) for b in range(4)]
    d = jnp.stack(blocks, axis=3)                                 # [N,4,4,16,32] (n,oh,ow,kpos,patch)
    d = d.reshape(N, 4, 4, 8, 64)                                 # pack kpos pairs -> (j, [2j;2j+1])
    return d.transpose(3, 0, 1, 2, 4).reshape(8, N * 16, 64)      # (j, n*16+opos, 64)


def pure_conv_classifier16(x, params):
    """x: [N, 2, 16, 16] float32 (NCHW) -> [N, 1, 1, 1] float32."""
    w1, w2, w3, gamma, beta = params
    N = x.shape[0]

    # Operand prep (tiny, one-time): packed im2col + lane-dense weight layouts.
    p1d = _layer1_patches_packed(x.astype(jnp.bfloat16))                    # [8, N*16, 64]

    w1_kc = w1.reshape(64, 32).T.astype(jnp.bfloat16)                       # [32, 64]
    z = jnp.zeros((32, 64), jnp.bfloat16)
    w1_bd = jnp.concatenate(
        [jnp.concatenate([w1_kc, z], axis=1),
         jnp.concatenate([z, w1_kc], axis=1)], axis=0)                      # [64, 128] block-diag
    w2_mat = w2.transpose(2, 3, 1, 0).reshape(16 * 64, 128) \
               .astype(jnp.bfloat16)                                        # rows = (kpos, cin)
    w3_r = w3[0].transpose(1, 2, 0).reshape(16, 128).astype(jnp.float32)    # [opos, cin]
    gamma_r = gamma.reshape(1, 128).astype(jnp.float32)
    beta_r = beta.reshape(1, 128).astype(jnp.float32)

    kernel = functools.partial(_fused_kernel, n=N)
    out = pl.pallas_call(
        kernel,
        out_shape=jax.ShapeDtypeStruct((N, 128), jnp.float32),
        in_specs=[
            pl.BlockSpec((8, N * 16, 64), lambda: (0, 0, 0)),
            pl.BlockSpec((64, 128), lambda: (0, 0)),
            pl.BlockSpec((1024, 128), lambda: (0, 0)),
            pl.BlockSpec((16, 128), lambda: (0, 0)),
            pl.BlockSpec((1, 128), lambda: (0, 0)),
            pl.BlockSpec((1, 128), lambda: (0, 0)),
        ],
        out_specs=pl.BlockSpec((N, 128), lambda: (0, 0)),
        scratch_shapes=[pltpu.VMEM((N * 16, 1024), jnp.bfloat16)],
        compiler_params=pltpu.CompilerParams(
            vmem_limit_bytes=32 * 1024 * 1024),   # generous; actual use < 1 MiB at N=2
    )(p1d, w1_bd, w2_mat, w3_r, gamma_r, beta_r)
    return out[:, 0].reshape(N, 1, 1, 1)


# ----------------------------------------------------------------------------
# Pure-JAX reference mirroring the kernel's precision choices (bf16 operands
# into conv1/conv2 with f32 accumulation; BN stats and layer 3 in f32).
# ----------------------------------------------------------------------------
def reference_forward(x, params, eps=1e-5):
    w1, w2, w3, gamma, beta = params
    dn = ("NCHW", "OIHW", "NCHW")
    h = lax.conv_general_dilated(
        x.astype(jnp.bfloat16), w1.astype(jnp.bfloat16), (2, 2),
        [(1, 1), (1, 1)], dimension_numbers=dn,
        preferred_element_type=jnp.float32)
    h = jnp.where(h >= 0, h, 0.2 * h)
    h = lax.conv_general_dilated(
        h.astype(jnp.bfloat16), w2.astype(jnp.bfloat16), (2, 2),
        [(1, 1), (1, 1)], dimension_numbers=dn,
        preferred_element_type=jnp.float32)
    mean = h.mean(axis=(0, 2, 3), keepdims=True)
    var = jnp.square(h - mean).mean(axis=(0, 2, 3), keepdims=True)
    h = (h - mean) * (gamma.reshape(1, -1, 1, 1) * lax.rsqrt(var + eps)) \
        + beta.reshape(1, -1, 1, 1)
    h = jnp.where(h >= 0, h, 0.2 * h)
    out = lax.conv_general_dilated(
        h, w3, (1, 1), [(0, 0), (0, 0)], dimension_numbers=dn,
        preferred_element_type=jnp.float32)
    return out


if __name__ == "__main__":
    key = jax.random.PRNGKey(0)
    k_x, k_w1, k_w2, k_w3, k_g, k_b = jax.random.split(key, 6)

    # Deterministic synthetic parameters (DCGAN-style scale); no checkpoint load.
    w1 = 0.02 * jax.random.normal(k_w1, (64, 2, 4, 4), jnp.float32)    # OIHW
    w2 = 0.02 * jax.random.normal(k_w2, (128, 64, 4, 4), jnp.float32)  # OIHW
    w3 = 0.02 * jax.random.normal(k_w3, (1, 128, 4, 4), jnp.float32)   # OIHW
    gamma = 1.0 + 0.02 * jax.random.normal(k_g, (128,), jnp.float32)
    beta = 0.02 * jax.random.normal(k_b, (128,), jnp.float32)
    params = (w1, w2, w3, gamma, beta)

    x = jax.random.normal(k_x, (2, 2, 16, 16), jnp.float32)            # NCHW

    fwd = jax.jit(pure_conv_classifier16)
    out = jax.block_until_ready(fwd(x, params))
    ref = jax.block_until_ready(reference_forward(x, params))

    assert out.shape == (2, 1, 1, 1), out.shape
    assert jnp.allclose(out, ref, atol=2e-3, rtol=2e-3), (out, ref)
    print("KERNEL_OK")
</pallas_src>

<mosaic_0001>
module attributes {stable_mosaic.version = 11 : i64} {
  func.func @_fused_kernel(%arg0: memref<8x32x64xbf16, #tpu.memory_space<vmem>>, %arg1: memref<64x128xbf16, #tpu.memory_space<vmem>>, %arg2: memref<1024x128xbf16, #tpu.memory_space<vmem>>, %arg3: memref<16x128xf32, #tpu.memory_space<vmem>>, %arg4: memref<1x128xf32, #tpu.memory_space<vmem>>, %arg5: memref<1x128xf32, #tpu.memory_space<vmem>>, %arg6: memref<2x128xf32, #tpu.memory_space<vmem>>, %arg7: memref<32x1024xbf16, #tpu.memory_space<vmem>>) attributes {dimension_semantics = [], scalar_prefetch = 0 : i64, scratch_operands = 1 : i64, tpu.core_type = #tpu.core_type<tc>} {
    %c0 = arith.constant 0 : index
    %c0_0 = arith.constant 0 : index
    %c0_1 = arith.constant 0 : index
    %0 = vector.load %arg0[%c0, %c0_0, %c0_1] : memref<8x32x64xbf16, #tpu.memory_space<vmem>>, vector<1x32x64xbf16>
    %1 = vector.shape_cast %0 : vector<1x32x64xbf16> to vector<32x64xbf16>
    %c0_2 = arith.constant 0 : index
    %c0_3 = arith.constant 0 : index
    %2 = vector.load %arg1[%c0_2, %c0_3] : memref<64x128xbf16, #tpu.memory_space<vmem>>, vector<64x128xbf16>
    %cst = arith.constant dense<0.000000e+00> : vector<32x128xf32>
    %3 = tpu.matmul %1, %2, %cst {dimension_numbers = #tpu.dot_dimension_numbers<[1], [0], [0], [1], [0, 0, 1, 1], [], []>} : vector<32x64xbf16>, vector<64x128xbf16>, vector<32x128xf32> -> vector<32x128xf32>
    %cst_4 = arith.constant 2.000000e-01 : f32
    %4 = vector.broadcast %cst_4 : f32 to vector<32x128xf32>
    %5 = arith.mulf %4, %3 : vector<32x128xf32>
    %6 = arith.maximumf %3, %5 : vector<32x128xf32>
    %7 = arith.truncf %6 : vector<32x128xf32> to vector<32x128xbf16>
    %c0_5 = arith.constant 0 : index
    %c0_6 = arith.constant 0 : index
    %8 = vector.load %arg7[%c0_5, %c0_6] : memref<32x1024xbf16, #tpu.memory_space<vmem>>, vector<32x128xbf16>
    tpu.vector_store %arg7[%c0_5, %c0_6], %7 {strides = array<i32>} : memref<32x1024xbf16, #tpu.memory_space<vmem>>, vector<32x128xbf16>,
    %c1 = arith.constant 1 : index
    %c0_7 = arith.constant 0 : index
    %c0_8 = arith.constant 0 : index
    %9 = vector.load %arg0[%c1, %c0_7, %c0_8] : memref<8x32x64xbf16, #tpu.memory_space<vmem>>, vector<1x32x64xbf16>
    %10 = vector.shape_cast %9 : vector<1x32x64xbf16> to vector<32x64xbf16>
    %c0_9 = arith.constant 0 : index
    %c0_10 = arith.constant 0 : index
    %11 = vector.load %arg1[%c0_9, %c0_10] : memref<64x128xbf16, #tpu.memory_space<vmem>>, vector<64x128xbf16>
    %cst_11 = arith.constant dense<0.000000e+00> : vector<32x128xf32>
    %12 = tpu.matmul %10, %11, %cst_11 {dimension_numbers = #tpu.dot_dimension_numbers<[1], [0], [0], [1], [0, 0, 1, 1], [], []>} : vector<32x64xbf16>, vector<64x128xbf16>, vector<32x128xf32> -> vector<32x128xf32>
    %cst_12 = arith.constant 2.000000e-01 : f32
    %13 = vector.broadcast %cst_12 : f32 to vector<32x128xf32>
    %14 = arith.mulf %13, %12 : vector<32x128xf32>
    %15 = arith.maximumf %12, %14 : vector<32x128xf32>
    %16 = arith.truncf %15 : vector<32x128xf32> to vector<32x128xbf16>
    %c0_13 = arith.constant 0 : index
    %c128 = arith.constant 128 : index
    %17 = vector.load %arg7[%c0_13, %c128] : memref<32x1024xbf16, #tpu.memory_space<vmem>>, vector<32x128xbf16>
    tpu.vector_store %arg7[%c0_13, %c128], %16 {strides = array<i32>} : memref<32x1024xbf16, #tpu.memory_space<vmem>>, vector<32x128xbf16>,
    %c2 = arith.constant 2 : index
    %c0_14 = arith.constant 0 : index
    %c0_15 = arith.constant 0 : index
    %18 = vector.load %arg0[%c2, %c0_14, %c0_15] : memref<8x32x64xbf16, #tpu.memory_space<vmem>>, vector<1x32x64xbf16>
    %19 = vector.shape_cast %18 : vector<1x32x64xbf16> to vector<32x64xbf16>
    %c0_16 = arith.constant 0 : index
    %c0_17 = arith.constant 0 : index
    %20 = vector.load %arg1[%c0_16, %c0_17] : memref<64x128xbf16, #tpu.memory_space<vmem>>, vector<64x128xbf16>
    %cst_18 = arith.constant dense<0.000000e+00> : vector<32x128xf32>
    %21 = tpu.matmul %19, %20, %cst_18 {dimension_numbers = #tpu.dot_dimension_numbers<[1], [0], [0], [1], [0, 0, 1, 1], [], []>} : vector<32x64xbf16>, vector<64x128xbf16>, vector<32x128xf32> -> vector<32x128xf32>
    %cst_19 = arith.constant 2.000000e-01 : f32
    %22 = vector.broadcast %cst_19 : f32 to vector<32x128xf32>
    %23 = arith.mulf %22, %21 : vector<32x128xf32>
    %24 = arith.maximumf %21, %23 : vector<32x128xf32>
    %25 = arith.truncf %24 : vector<32x128xf32> to vector<32x128xbf16>
    %c0_20 = arith.constant 0 : index
    %c256 = arith.constant 256 : index
    %26 = vector.load %arg7[%c0_20, %c256] : memref<32x1024xbf16, #tpu.memory_space<vmem>>, vector<32x128xbf16>
    tpu.vector_store %arg7[%c0_20, %c256], %25 {strides = array<i32>} : memref<32x1024xbf16, #tpu.memory_space<vmem>>, vector<32x128xbf16>,
    %c3 = arith.constant 3 : index
    %c0_21 = arith.constant 0 : index
    %c0_22 = arith.constant 0 : index
    %27 = vector.load %arg0[%c3, %c0_21, %c0_22] : memref<8x32x64xbf16, #tpu.memory_space<vmem>>, vector<1x32x64xbf16>
    %28 = vector.shape_cast %27 : vector<1x32x64xbf16> to vector<32x64xbf16>
    %c0_23 = arith.constant 0 : index
    %c0_24 = arith.constant 0 : index
    %29 = vector.load %arg1[%c0_23, %c0_24] : memref<64x128xbf16, #tpu.memory_space<vmem>>, vector<64x128xbf16>
    %cst_25 = arith.constant dense<0.000000e+00> : vector<32x128xf32>
    %30 = tpu.matmul %28, %29, %cst_25 {dimension_numbers = #tpu.dot_dimension_numbers<[1], [0], [0], [1], [0, 0, 1, 1], [], []>} : vector<32x64xbf16>, vector<64x128xbf16>, vector<32x128xf32> -> vector<32x128xf32>
    %cst_26 = arith.constant 2.000000e-01 : f32
    %31 = vector.broadcast %cst_26 : f32 to vector<32x128xf32>
    %32 = arith.mulf %31, %30 : vector<32x128xf32>
    %33 = arith.maximumf %30, %32 : vector<32x128xf32>
    %34 = arith.truncf %33 : vector<32x128xf32> to vector<32x128xbf16>
    %c0_27 = arith.constant 0 : index
    %c384 = arith.constant 384 : index
    %35 = vector.load %arg7[%c0_27, %c384] : memref<32x1024xbf16, #tpu.memory_space<vmem>>, vector<32x128xbf16>
    tpu.vector_store %arg7[%c0_27, %c384], %34 {strides = array<i32>} : memref<32x1024xbf16, #tpu.memory_space<vmem>>, vector<32x128xbf16>,
    %c4 = arith.constant 4 : index
    %c0_28 = arith.constant 0 : index
    %c0_29 = arith.constant 0 : index
    %36 = vector.load %arg0[%c4, %c0_28, %c0_29] : memref<8x32x64xbf16, #tpu.memory_space<vmem>>, vector<1x32x64xbf16>
    %37 = vector.shape_cast %36 : vector<1x32x64xbf16> to vector<32x64xbf16>
    %c0_30 = arith.constant 0 : index
    %c0_31 = arith.constant 0 : index
    %38 = vector.load %arg1[%c0_30, %c0_31] : memref<64x128xbf16, #tpu.memory_space<vmem>>, vector<64x128xbf16>
    %cst_32 = arith.constant dense<0.000000e+00> : vector<32x128xf32>
    %39 = tpu.matmul %37, %38, %cst_32 {dimension_numbers = #tpu.dot_dimension_numbers<[1], [0], [0], [1], [0, 0, 1, 1], [], []>} : vector<32x64xbf16>, vector<64x128xbf16>, vector<32x128xf32> -> vector<32x128xf32>
    %cst_33 = arith.constant 2.000000e-01 : f32
    %40 = vector.broadcast %cst_33 : f32 to vector<32x128xf32>
    %41 = arith.mulf %40, %39 : vector<32x128xf32>
    %42 = arith.maximumf %39, %41 : vector<32x128xf32>
    %43 = arith.truncf %42 : vector<32x128xf32> to vector<32x128xbf16>
    %c0_34 = arith.constant 0 : index
    %c512 = arith.constant 512 : index
    %44 = vector.load %arg7[%c0_34, %c512] : memref<32x1024xbf16, #tpu.memory_space<vmem>>, vector<32x128xbf16>
    tpu.vector_store %arg7[%c0_34, %c512], %43 {strides = array<i32>} : memref<32x1024xbf16, #tpu.memory_space<vmem>>, vector<32x128xbf16>,
    %c5 = arith.constant 5 : index
    %c0_35 = arith.constant 0 : index
    %c0_36 = arith.constant 0 : index
    %45 = vector.load %arg0[%c5, %c0_35, %c0_36] : memref<8x32x64xbf16, #tpu.memory_space<vmem>>, vector<1x32x64xbf16>
    %46 = vector.shape_cast %45 : vector<1x32x64xbf16> to vector<32x64xbf16>
    %c0_37 = arith.constant 0 : index
    %c0_38 = arith.constant 0 : index
    %47 = vector.load %arg1[%c0_37, %c0_38] : memref<64x128xbf16, #tpu.memory_space<vmem>>, vector<64x128xbf16>
    %cst_39 = arith.constant dense<0.000000e+00> : vector<32x128xf32>
    %48 = tpu.matmul %46, %47, %cst_39 {dimension_numbers = #tpu.dot_dimension_numbers<[1], [0], [0], [1], [0, 0, 1, 1], [], []>} : vector<32x64xbf16>, vector<64x128xbf16>, vector<32x128xf32> -> vector<32x128xf32>
    %cst_40 = arith.constant 2.000000e-01 : f32
    %49 = vector.broadcast %cst_40 : f32 to vector<32x128xf32>
    %50 = arith.mulf %49, %48 : vector<32x128xf32>
    %51 = arith.maximumf %48, %50 : vector<32x128xf32>
    %52 = arith.truncf %51 : vector<32x128xf32> to vector<32x128xbf16>
    %c0_41 = arith.constant 0 : index
    %c640 = arith.constant 640 : index
    %53 = vector.load %arg7[%c0_41, %c640] : memref<32x1024xbf16, #tpu.memory_space<vmem>>, vector<32x128xbf16>
    tpu.vector_store %arg7[%c0_41, %c640], %52 {strides = array<i32>} : memref<32x1024xbf16, #tpu.memory_space<vmem>>, vector<32x128xbf16>,
    %c6 = arith.constant 6 : index
    %c0_42 = arith.constant 0 : index
    %c0_43 = arith.constant 0 : index
    %54 = vector.load %arg0[%c6, %c0_42, %c0_43] : memref<8x32x64xbf16, #tpu.memory_space<vmem>>, vector<1x32x64xbf16>
    %55 = vector.shape_cast %54 : vector<1x32x64xbf16> to vector<32x64xbf16>
    %c0_44 = arith.constant 0 : index
    %c0_45 = arith.constant 0 : index
    %56 = vector.load %arg1[%c0_44, %c0_45] : memref<64x128xbf16, #tpu.memory_space<vmem>>, vector<64x128xbf16>
    %cst_46 = arith.constant dense<0.000000e+00> : vector<32x128xf32>
    %57 = tpu.matmul %55, %56, %cst_46 {dimension_numbers = #tpu.dot_dimension_numbers<[1], [0], [0], [1], [0, 0, 1, 1], [], []>} : vector<32x64xbf16>, vector<64x128xbf16>, vector<32x128xf32> -> vector<32x128xf32>
    %cst_47 = arith.constant 2.000000e-01 : f32
    %58 = vector.broadcast %cst_47 : f32 to vector<32x128xf32>
    %59 = arith.mulf %58, %57 : vector<32x128xf32>
    %60 = arith.maximumf %57, %59 : vector<32x128xf32>
    %61 = arith.truncf %60 : vector<32x128xf32> to vector<32x128xbf16>
    %c0_48 = arith.constant 0 : index
    %c768 = arith.constant 768 : index
    %62 = vector.load %arg7[%c0_48, %c768] : memref<32x1024xbf16, #tpu.memory_space<vmem>>, vector<32x128xbf16>
    tpu.vector_store %arg7[%c0_48, %c768], %61 {strides = array<i32>} : memref<32x1024xbf16, #tpu.memory_space<vmem>>, vector<32x128xbf16>,
    %c7 = arith.constant 7 : index
    %c0_49 = arith.constant 0 : index
    %c0_50 = arith.constant 0 : index
    %63 = vector.load %arg0[%c7, %c0_49, %c0_50] : memref<8x32x64xbf16, #tpu.memory_space<vmem>>, vector<1x32x64xbf16>
    %64 = vector.shape_cast %63 : vector<1x32x64xbf16> to vector<32x64xbf16>
    %c0_51 = arith.constant 0 : index
    %c0_52 = arith.constant 0 : index
    %65 = vector.load %arg1[%c0_51, %c0_52] : memref<64x128xbf16, #tpu.memory_space<vmem>>, vector<64x128xbf16>
    %cst_53 = arith.constant dense<0.000000e+00> : vector<32x128xf32>
    %66 = tpu.matmul %64, %65, %cst_53 {dimension_numbers = #tpu.dot_dimension_numbers<[1], [0], [0], [1], [0, 0, 1, 1], [], []>} : vector<32x64xbf16>, vector<64x128xbf16>, vector<32x128xf32> -> vector<32x128xf32>
    %cst_54 = arith.constant 2.000000e-01 : f32
    %67 = vector.broadcast %cst_54 : f32 to vector<32x128xf32>
    %68 = arith.mulf %67, %66 : vector<32x128xf32>
    %69 = arith.maximumf %66, %68 : vector<32x128xf32>
    %70 = arith.truncf %69 : vector<32x128xf32> to vector<32x128xbf16>
    %c0_55 = arith.constant 0 : index
    %c896 = arith.constant 896 : index
    %71 = vector.load %arg7[%c0_55, %c896] : memref<32x1024xbf16, #tpu.memory_space<vmem>>, vector<32x128xbf16>
    tpu.vector_store %arg7[%c0_55, %c896], %70 {strides = array<i32>} : memref<32x1024xbf16, #tpu.memory_space<vmem>>, vector<32x128xbf16>,
    %c0_56 = arith.constant 0 : index
    %c0_57 = arith.constant 0 : index
    %72 = vector.load %arg7[%c0_56, %c0_57] : memref<32x1024xbf16, #tpu.memory_space<vmem>>, vector<32x1024xbf16>
    %c0_58 = arith.constant 0 : index
    %c0_59 = arith.constant 0 : index
    %73 = vector.load %arg2[%c0_58, %c0_59] : memref<1024x128xbf16, #tpu.memory_space<vmem>>, vector<1024x128xbf16>
    %cst_60 = arith.constant dense<0.000000e+00> : vector<32x128xf32>
    %74 = tpu.matmul %72, %73, %cst_60 {dimension_numbers = #tpu.dot_dimension_numbers<[1], [0], [0], [1], [0, 0, 1, 1], [], []>} : vector<32x1024xbf16>, vector<1024x128xbf16>, vector<32x128xf32> -> vector<32x128xf32>
    %cst_61 = arith.constant dense<0.000000e+00> : vector<128xf32>
    %75 = vector.multi_reduction <add>, %74, %cst_61 [0] : vector<32x128xf32> to vector<128xf32>
    %76 = vector.shape_cast %75 : vector<128xf32> to vector<1x128xf32>
    %77 = arith.mulf %74, %74 : vector<32x128xf32>
    %cst_62 = arith.constant dense<0.000000e+00> : vector<128xf32>
    %78 = vector.multi_reduction <add>, %77, %cst_62 [0] : vector<32x128xf32> to vector<128xf32>
    %79 = vector.shape_cast %78 : vector<128xf32> to vector<1x128xf32>
    %cst_63 = arith.constant 3.125000e-02 : f32
    %80 = vector.broadcast %cst_63 : f32 to vector<1x128xf32>
    %81 = arith.mulf %76, %80 : vector<1x128xf32>
    %cst_64 = arith.constant 3.125000e-02 : f32
    %82 = vector.broadcast %cst_64 : f32 to vector<1x128xf32>
    %83 = arith.mulf %79, %82 : vector<1x128xf32>
    %84 = arith.mulf %81, %81 : vector<1x128xf32>
    %85 = arith.subf %83, %84 : vector<1x128xf32>
    %86 = vector.broadcast %81 : vector<1x128xf32> to vector<32x128xf32>
    %87 = arith.subf %74, %86 : vector<32x128xf32>
    %c0_65 = arith.constant 0 : index
    %c0_66 = arith.constant 0 : index
    %88 = vector.load %arg4[%c0_65, %c0_66] : memref<1x128xf32, #tpu.memory_space<vmem>>, vector<1x128xf32>
    %cst_67 = arith.constant 9.99999974E-6 : f32
    %89 = vector.broadcast %cst_67 : f32 to vector<1x128xf32>
    %90 = arith.addf %85, %89 : vector<1x128xf32>
    %91 = math.rsqrt %90 : vector<1x128xf32>
    %92 = arith.mulf %88, %91 : vector<1x128xf32>
    %93 = vector.broadcast %92 : vector<1x128xf32> to vector<32x128xf32>
    %94 = arith.mulf %87, %93 : vector<32x128xf32>
    %c0_68 = arith.constant 0 : index
    %c0_69 = arith.constant 0 : index
    %95 = vector.load %arg5[%c0_68, %c0_69] : memref<1x128xf32, #tpu.memory_space<vmem>>, vector<1x128xf32>
    %96 = vector.broadcast %95 : vector<1x128xf32> to vector<32x128xf32>
    %97 = arith.addf %94, %96 : vector<32x128xf32>
    %cst_70 = arith.constant 2.000000e-01 : f32
    %98 = vector.broadcast %cst_70 : f32 to vector<32x128xf32>
    %99 = arith.mulf %98, %97 : vector<32x128xf32>
    %100 = arith.maximumf %97, %99 : vector<32x128xf32>
    %101 = vector.shape_cast %100 : vector<32x128xf32> to vector<2x16x128xf32>
    %c0_71 = arith.constant 0 : index
    %c0_72 = arith.constant 0 : index
    %102 = vector.load %arg3[%c0_71, %c0_72] : memref<16x128xf32, #tpu.memory_space<vmem>>, vector<16x128xf32>
    %103 = vector.shape_cast %102 : vector<16x128xf32> to vector<1x16x128xf32>
    %104 = vector.broadcast %103 : vector<1x16x128xf32> to vector<2x16x128xf32>
    %105 = arith.mulf %101, %104 : vector<2x16x128xf32>
    %cst_73 = arith.constant dense<0.000000e+00> : vector<2x16xf32>
    %106 = vector.multi_reduction <add>, %105, %cst_73 [2] : vector<2x16x128xf32> to vector<2x16xf32>
    %107 = vector.shape_cast %106 : vector<2x16xf32> to vector<2x16x1xf32>
    %cst_74 = arith.constant dense<0.000000e+00> : vector<2x1xf32>
    %108 = vector.multi_reduction <add>, %107, %cst_74 [1] : vector<2x16x1xf32> to vector<2x1xf32>
    %109 = vector.shape_cast %108 : vector<2x1xf32> to vector<2x1xf32>
    %110 = vector.broadcast %109 : vector<2x1xf32> to vector<2x128xf32>
    %c0_75 = arith.constant 0 : index
    %c0_76 = arith.constant 0 : index
    %111 = vector.load %arg6[%c0_75, %c0_76] : memref<2x128xf32, #tpu.memory_space<vmem>>, vector<2x128xf32>
    tpu.vector_store %arg6[%c0_75, %c0_76], %110 {strides = array<i32>} : memref<2x128xf32, #tpu.memory_space<vmem>>, vector<2x128xf32>,
    return
  }
}

</mosaic_0001>

<llo_original>
// kernel: pure_conv_classifier16.1
$region0: #{pure_conv_classifier16.1}
  #allocation0 [shape = 'u32[]', space=smem, size = 0x4, offset = 0x4, fixed_abs, tag = 'smem constant byte address 0x4 - core index']
  #allocation1 [shape = 'u32[144,128]{1,0:T(1,128)}', space=vmem, size = 0x12000, scoped, tag = 'internal scratch']
  #allocation2 [shape = 'bf16[32,1024]{1,0:T(16,128)(2,1)}', space=vmem, size = 0x10000, scoped, tag = 'scratch operand']
  %s0 = inlined_call_operand.vmem [shape: bf16[8,32,64], index: 0, kind: input, shape index: {}]
  %s1 = inlined_call_operand.vmem [shape: bf16[64,128], index: 1, kind: input, shape index: {}]
  %s2 = inlined_call_operand.vmem [shape: bf16[1024,128], index: 2, kind: input, shape index: {}]
  %s3 = inlined_call_operand.vmem [shape: f32[16,128], index: 3, kind: input, shape index: {}]
  %s4 = inlined_call_operand.vmem [shape: f32[1,128], index: 4, kind: input, shape index: {}]
  %s5 = inlined_call_operand.vmem [shape: f32[1,128], index: 5, kind: input, shape index: {}]
  %s6 = inlined_call_operand.vmem [shape: f32[2,128], index: 6, kind: output, shape index: {}]
  %s7 = sld [smem:[#allocation0]]
  $region34: #{pure_conv_classifier16.1} parent=0
    _
  %s9 = ssub.s32 1, %s7
  %s10 = scalar_select 0, %s9, %s7
  // Predicated region
  $region2: #{pure_conv_classifier16.1} parent=0 // pred_check
    _
  $region3: #{pure_conv_classifier16.1} parent=0 // pred_check_branch
    %12 = sbr.rel (0) target = $region5
  $region4: #{pure_conv_classifier16.1} parent=0 // pred_region
    _
  $region5: #{pure_conv_classifier16.1} parent=0 // pred_fallthru
    _
  // Predicated region
  $region6: #{pure_conv_classifier16.1} parent=0 // pred_check
    _
  $region7: #{pure_conv_classifier16.1} parent=0 // pred_check_branch
    %14 = sbr.rel (0) target = $region9
  $region8: #{pure_conv_classifier16.1} parent=0 // pred_region
    _
  $region9: #{pure_conv_classifier16.1} parent=0 // pred_fallthru
    _
  // Predicated region
  $region10: #{pure_conv_classifier16.1} parent=0 // pred_check
    _
  $region11: #{pure_conv_classifier16.1} parent=0 // pred_check_branch
    %16 = sbr.rel (0) target = $region13
  $region12: #{pure_conv_classifier16.1} parent=0 // pred_region
    _
  $region13: #{pure_conv_classifier16.1} parent=0 // pred_fallthru
    _
  // Predicated region
  $region14: #{pure_conv_classifier16.1} parent=0 // pred_check
    _
  $region15: #{pure_conv_classifier16.1} parent=0 // pred_check_branch
    %18 = sbr.rel (0) target = $region17
  $region16: #{pure_conv_classifier16.1} parent=0 // pred_region
    _
  $region17: #{pure_conv_classifier16.1} parent=0 // pred_fallthru
    _
  // Predicated region
  $region18: #{pure_conv_classifier16.1} parent=0 // pred_check
    _
  $region19: #{pure_conv_classifier16.1} parent=0 // pred_check_branch
    %20 = sbr.rel (0) target = $region21
  $region20: #{pure_conv_classifier16.1} parent=0 // pred_region
    _
  $region21: #{pure_conv_classifier16.1} parent=0 // pred_fallthru
    _
  // Predicated region
  $region22: #{pure_conv_classifier16.1} parent=0 // pred_check
    _
  $region23: #{pure_conv_classifier16.1} parent=0 // pred_check_branch
    %22 = sbr.rel (0) target = $region25
  $region24: #{pure_conv_classifier16.1} parent=0 // pred_region
    _
  $region25: #{pure_conv_classifier16.1} parent=0 // pred_fallthru
    _
  %v24 = vld [vmem:[%s0] sm:$0xf]
  %v25 = vld [vmem:[%s0 + $0x4] sm:$0xf]
  %v26 = vld [vmem:[%s0 + $0x8] sm:$0xf]
  %v27 = vld [vmem:[%s0 + $0xc] sm:$0xf]
  %v28 = vld [vmem:[%s1] sm:$0xf]
  %v29 = vld [vmem:[%s1 + $0x4] sm:$0xf]
  %v30 = vld [vmem:[%s1 + $0x8] sm:$0xf]
  %v31 = vld [vmem:[%s1 + $0xc] sm:$0xf]
  %v32 = vld [vmem:[%s1 + $0x10] sm:$0xf]
  %v33 = vld [vmem:[%s1 + $0x14] sm:$0xf]
  %v34 = vld [vmem:[%s1 + $0x18] sm:$0xf]
  %v35 = vld [vmem:[%s1 + $0x1c] sm:$0xf]
  %v40 = vunpack.c.l.b16 %v24
  %v41 = vunpack.c.l.b16 %v25
  %v42 = vunpack.c.l.b16 %v26
  %v43 = vunpack.c.l.b16 %v27
  %v44 = vpack.c.b16 %v41, %v40
  %v45 = vpack.c.b16 %v43, %v42
  %v54 = vunpack.c.l.b16 %v28
  %v55 = vunpack.c.l.b16 %v29
  %v56 = vunpack.c.l.b16 %v30
  %v57 = vunpack.c.l.b16 %v31
  %v58 = vunpack.c.l.b16 %v32
  %v59 = vunpack.c.l.b16 %v33
  %v60 = vunpack.c.l.b16 %v34
  %v61 = vunpack.c.l.b16 %v35
  %v62 = vpack.c.b16 %v55, %v54
  %v63 = vpack.c.b16 %v57, %v56
  %v64 = vpack.c.b16 %v59, %v58
  %v65 = vpack.c.b16 %v61, %v60
  %vm70 = vcmask 523264
  %v72 = vsel %vm70, %v44, 0
  %v75 = vsel %vm70, %v45, 0
  %77 = vmatprep.subr.bf16.mxu0 0
  %78 = vmatpush1.bf16.msra.mxu0 %v62
  %79 = vmatprep.subr.bf16.mxu0 0
  %80 = vmatpush1.bf16.msra.mxu0 %v63
  %81 = vmatprep.subr.bf16.mxu0 0
  %82 = vmatpush1.bf16.msra.mxu0 %v64
  %83 = vmatprep.subr.bf16.mxu0 0
  %84 = vmatpush1.bf16.msra.mxu0 %v65
  %85 = vmatprep.subr.bf16.mxu0 0
  %86 = vmatpush1.bf16.msra.mxu0 0
  %87 = vmatprep.subr.bf16.mxu0 0
  %88 = vmatpush1.bf16.msra.mxu0 0
  %89 = vmatprep.subr.bf16.mxu0 0
  %90 = vmatpush1.bf16.msra.mxu0 0
  %91 = vmatprep.subr.bf16.mxu0 0
  %92 = vmatpush1.bf16.msra.mxu0 0
  %93 = vmatprep.subr.bf16.mxu0 0
  %94 = vmatpush1.bf16.msra.mxu0 0
  %95 = vmatprep.subr.bf16.mxu0 0
  %96 = vmatpush1.bf16.msra.mxu0 0
  %97 = vmatprep.subr.bf16.mxu0 0
  %98 = vmatpush1.bf16.msra.mxu0 0
  %99 = vmatprep.subr.bf16.mxu0 0
  %100 = vmatpush1.bf16.msra.mxu0 0
  %101 = vmatprep.subr.bf16.mxu0 0
  %102 = vmatpush1.bf16.msra.mxu0 0
  %103 = vmatprep.subr.bf16.mxu0 0
  %104 = vmatpush1.bf16.msra.mxu0 0
  %105 = vmatprep.subr.bf16.mxu0 0
  %106 = vmatpush1.bf16.msra.mxu0 0
  %107 = vmatprep.subr.bf16.mxu0 0
  %108 = vmatpush1.bf16.msra.mxu0 0
  %109 = vmatprep.mubr.bf16.mxu0 0
  %110 = vmatmul.mubr.bf16.gmra.mrb[0].mxu0 %v72
  %v111 = vpop.f32.mrb[0].mxu0
  %v112 = vadd.f32 0.0, %v111
  %v113 = vpop.f32.mrb[0].mxu0
  %v114 = vpop.f32.mrb[0].mxu0
  %v115 = vadd.f32 0.0, %v114
  %v116 = vpop.f32.mrb[0].mxu0
  %117 = vmatprep.mubr.bf16.mxu0 0
  %118 = vmatmul.mubr.bf16.gmra.mrb[0].mxu0 %v75
  %v119 = vpop.f32.mrb[0].mxu0
  %v120 = vadd.f32 0.0, %v119
  %v121 = vpop.f32.mrb[0].mxu0
  %v122 = vpop.f32.mrb[0].mxu0
  %v123 = vadd.f32 0.0, %v122
  %v124 = vpop.f32.mrb[0].mxu0
  %125 = vdwg.mxu0
  %v126 = vmul.f32 %v112, 0.2
  %v127 = vmul.f32 %v115, 0.2
  %v128 = vmul.f32 %v120, 0.2
  %v129 = vmul.f32 %v123, 0.2
  %v130 = vmax.f32 %v112, %v126
  %v131 = vmax.f32 %v115, %v127
  %v132 = vmax.f32 %v120, %v128
  %v133 = vmax.f32 %v123, %v129
  %v134 = vpack.c.bf16 %v131, %v130
  %v135 = vpack.c.bf16 %v133, %v132
  %136 = vst [vmem:[#allocation2] sm:$0xff] %v134
  %137 = vst [vmem:[#allocation2 + $0x40] sm:$0xff] %v135
  %s138 = scalar_lea.vmem %s0, 16
  %v139 = vld [vmem:[%s138] sm:$0xf]
  %v140 = vld [vmem:[%s138 + $0x4] sm:$0xf]
  %v141 = vld [vmem:[%s138 + $0x8] sm:$0xf]
  %v142 = vld [vmem:[%s138 + $0xc] sm:$0xf]
  %v143 = vld [vmem:[%s1] sm:$0xf]
  %v144 = vld [vmem:[%s1 + $0x4] sm:$0xf]
  %v145 = vld [vmem:[%s1 + $0x8] sm:$0xf]
  %v146 = vld [vmem:[%s1 + $0xc] sm:$0xf]
  %v147 = vld [vmem:[%s1 + $0x10] sm:$0xf]
  %v148 = vld [vmem:[%s1 + $0x14] sm:$0xf]
  %v149 = vld [vmem:[%s1 + $0x18] sm:$0xf]
  %v150 = vld [vmem:[%s1 + $0x1c] sm:$0xf]
  %v155 = vunpack.c.l.b16 %v139
  %v156 = vunpack.c.l.b16 %v140
  %v157 = vunpack.c.l.b16 %v141
  %v158 = vunpack.c.l.b16 %v142
  %v159 = vpack.c.b16 %v156, %v155
  %v160 = vpack.c.b16 %v158, %v157
  %v169 = vunpack.c.l.b16 %v143
  %v170 = vunpack.c.l.b16 %v144
  %v171 = vunpack.c.l.b16 %v145
  %v172 = vunpack.c.l.b16 %v146
  %v173 = vunpack.c.l.b16 %v147
  %v174 = vunpack.c.l.b16 %v148
  %v175 = vunpack.c.l.b16 %v149
  %v176 = vunpack.c.l.b16 %v150
  %v177 = vpack.c.b16 %v170, %v169
  %v178 = vpack.c.b16 %v172, %v171
  %v179 = vpack.c.b16 %v174, %v173
  %v180 = vpack.c.b16 %v176, %v175
  %v186 = vsel %vm70, %v159, 0
  %v189 = vsel %vm70, %v160, 0
  %191 = vmatprep.subr.bf16.mxu0 0
  %192 = vmatpush1.bf16.msra.mxu0 %v177
  %193 = vmatprep.subr.bf16.mxu0 0
  %194 = vmatpush1.bf16.msra.mxu0 %v178
  %195 = vmatprep.subr.bf16.mxu0 0
  %196 = vmatpush1.bf16.msra.mxu0 %v179
  %197 = vmatprep.subr.bf16.mxu0 0
  %198 = vmatpush1.bf16.msra.mxu0 %v180
  %199 = vmatprep.subr.bf16.mxu0 0
  %200 = vmatpush1.bf16.msra.mxu0 0
  %201 = vmatprep.subr.bf16.mxu0 0
  %202 = vmatpush1.bf16.msra.mxu0 0
  %203 = vmatprep.subr.bf16.mxu0 0
  %204 = vmatpush1.bf16.msra.mxu0 0
  %205 = vmatprep.subr.bf16.mxu0 0
  %206 = vmatpush1.bf16.msra.mxu0 0
  %207 = vmatprep.subr.bf16.mxu0 0
  %208 = vmatpush1.bf16.msra.mxu0 0
  %209 = vmatprep.subr.bf16.mxu0 0
  %210 = vmatpush1.bf16.msra.mxu0 0
  %211 = vmatprep.subr.bf16.mxu0 0
  %212 = vmatpush1.bf16.msra.mxu0 0
  %213 = vmatprep.subr.bf16.mxu0 0
  %214 = vmatpush1.bf16.msra.mxu0 0
  %215 = vmatprep.subr.bf16.mxu0 0
  %216 = vmatpush1.bf16.msra.mxu0 0
  %217 = vmatprep.subr.bf16.mxu0 0
  %218 = vmatpush1.bf16.msra.mxu0 0
  %219 = vmatprep.subr.bf16.mxu0 0
  %220 = vmatpush1.bf16.msra.mxu0 0
  %221 = vmatprep.subr.bf16.mxu0 0
  %222 = vmatpush1.bf16.msra.mxu0 0
  %223 = vmatprep.mubr.bf16.mxu0 0
  %224 = vmatmul.mubr.bf16.gmra.mrb[0].mxu0 %v186
  %v225 = vpop.f32.mrb[0].mxu0
  %v226 = vadd.f32 0.0, %v225
  %v227 = vpop.f32.mrb[0].mxu0
  %v228 = vpop.f32.mrb[0].mxu0
  %v229 = vadd.f32 0.0, %v228
  %v230 = vpop.f32.mrb[0].mxu0
  %231 = vmatprep.mubr.bf16.mxu0 0
  %232 = vmatmul.mubr.bf16.gmra.mrb[0].mxu0 %v189
  %v233 = vpop.f32.mrb[0].mxu0
  %v234 = vadd.f32 0.0, %v233
  %v235 = vpop.f32.mrb[0].mxu0
  %v236 = vpop.f32.mrb[0].mxu0
  %v237 = vadd.f32 0.0, %v236
  %v238 = vpop.f32.mrb[0].mxu0
  %239 = vdwg.mxu0
  %v240 = vmul.f32 %v226, 0.2
  %v241 = vmul.f32 %v229, 0.2
  %v242 = vmul.f32 %v234, 0.2
  %v243 = vmul.f32 %v237, 0.2
  %v244 = vmax.f32 %v226, %v240
  %v245 = vmax.f32 %v229, %v241
  %v246 = vmax.f32 %v234, %v242
  %v247 = vmax.f32 %v237, %v243
  %v248 = vpack.c.bf16 %v245, %v244
  %v249 = vpack.c.bf16 %v247, %v246
  %250 = vst [vmem:[#allocation2 + $0x8] sm:$0xff] %v248
  %251 = vst [vmem:[#allocation2 + $0x48] sm:$0xff] %v249
  %s252 = scalar_lea.vmem %s0, 32
  %v253 = vld [vmem:[%s252] sm:$0xf]
  %v254 = vld [vmem:[%s252 + $0x4] sm:$0xf]
  %v255 = vld [vmem:[%s252 + $0x8] sm:$0xf]
  %v256 = vld [vmem:[%s252 + $0xc] sm:$0xf]
  %v257 = vld [vmem:[%s1] sm:$0xf]
  %v258 = vld [vmem:[%s1 + $0x4] sm:$0xf]
  %v259 = vld [vmem:[%s1 + $0x8] sm:$0xf]
  %v260 = vld [vmem:[%s1 + $0xc] sm:$0xf]
  %v261 = vld [vmem:[%s1 + $0x10] sm:$0xf]
  %v262 = vld [vmem:[%s1 + $0x14] sm:$0xf]
  %v263 = vld [vmem:[%s1 + $0x18] sm:$0xf]
  %v264 = vld [vmem:[%s1 + $0x1c] sm:$0xf]
  %v269 = vunpack.c.l.b16 %v253
  %v270 = vunpack.c.l.b16 %v254
  %v271 = vunpack.c.l.b16 %v255
  %v272 = vunpack.c.l.b16 %v256
  %v273 = vpack.c.b16 %v270, %v269
  %v274 = vpack.c.b16 %v272, %v271
  %v283 = vunpack.c.l.b16 %v257
  %v284 = vunpack.c.l.b16 %v258
  %v285 = vunpack.c.l.b16 %v259
  %v286 = vunpack.c.l.b16 %v260
  %v287 = vunpack.c.l.b16 %v261
  %v288 = vunpack.c.l.b16 %v262
  %v289 = vunpack.c.l.b16 %v263
  %v290 = vunpack.c.l.b16 %v264
  %v291 = vpack.c.b16 %v284, %v283
  %v292 = vpack.c.b16 %v286, %v285
  %v293 = vpack.c.b16 %v288, %v287
  %v294 = vpack.c.b16 %v290, %v289
  %v300 = vsel %vm70, %v273, 0
  %v303 = vsel %vm70, %v274, 0
  %305 = vmatprep.subr.bf16.mxu0 0
  %306 = vmatpush1.bf16.msra.mxu0 %v291
  %307 = vmatprep.subr.bf16.mxu0 0
  %308 = vmatpush1.bf16.msra.mxu0 %v292
  %309 = vmatprep.subr.bf16.mxu0 0
  %310 = vmatpush1.bf16.msra.mxu0 %v293
  %311 = vmatprep.subr.bf16.mxu0 0
  %312 = vmatpush1.bf16.msra.mxu0 %v294
  %313 = vmatprep.subr.bf16.mxu0 0
  %314 = vmatpush1.bf16.msra.mxu0 0
  %315 = vmatprep.subr.bf16.mxu0 0
  %316 = vmatpush1.bf16.msra.mxu0 0
  %317 = vmatprep.subr.bf16.mxu0 0
  %318 = vmatpush1.bf16.msra.mxu0 0
  %319 = vmatprep.subr.bf16.mxu0 0
  %320 = vmatpush1.bf16.msra.mxu0 0
  %321 = vmatprep.subr.bf16.mxu0 0
  %322 = vmatpush1.bf16.msra.mxu0 0
  %323 = vmatprep.subr.bf16.mxu0 0
  %324 = vmatpush1.bf16.msra.mxu0 0
  %325 = vmatprep.subr.bf16.mxu0 0
  %326 = vmatpush1.bf16.msra.mxu0 0
  %327 = vmatprep.subr.bf16.mxu0 0
  %328 = vmatpush1.bf16.msra.mxu0 0
  %329 = vmatprep.subr.bf16.mxu0 0
  %330 = vmatpush1.bf16.msra.mxu0 0
  %331 = vmatprep.subr.bf16.mxu0 0
  %332 = vmatpush1.bf16.msra.mxu0 0
  %333 = vmatprep.subr.bf16.mxu0 0
  %334 = vmatpush1.bf16.msra.mxu0 0
  %335 = vmatprep.subr.bf16.mxu0 0
  %336 = vmatpush1.bf16.msra.mxu0 0
  %337 = vmatprep.mubr.bf16.mxu0 0
  %338 = vmatmul.mubr.bf16.gmra.mrb[0].mxu0 %v300
  %v339 = vpop.f32.mrb[0].mxu0
  %v340 = vadd.f32 0.0, %v339
  %v341 = vpop.f32.mrb[0].mxu0
  %v342 = vpop.f32.mrb[0].mxu0
  %v343 = vadd.f32 0.0, %v342
  %v344 = vpop.f32.mrb[0].mxu0
  %345 = vmatprep.mubr.bf16.mxu0 0
  %346 = vmatmul.mubr.bf16.gmra.mrb[0].mxu0 %v303
  %v347 = vpop.f32.mrb[0].mxu0
  %v348 = vadd.f32 0.0, %v347
  %v349 = vpop.f32.mrb[0].mxu0
  %v350 = vpop.f32.mrb[0].mxu0
  %v351 = vadd.f32 0.0, %v350
  %v352 = vpop.f32.mrb[0].mxu0
  %353 = vdwg.mxu0
  %v354 = vmul.f32 %v340, 0.2
  %v355 = vmul.f32 %v343, 0.2
  %v356 = vmul.f32 %v348, 0.2
  %v357 = vmul.f32 %v351, 0.2
  %v358 = vmax.f32 %v340, %v354
  %v359 = vmax.f32 %v343, %v355
  %v360 = vmax.f32 %v348, %v356
  %v361 = vmax.f32 %v351, %v357
  %v362 = vpack.c.bf16 %v359, %v358
  %v363 = vpack.c.bf16 %v361, %v360
  %364 = vst [vmem:[#allocation2 + $0x10] sm:$0xff] %v362
  %365 = vst [vmem:[#allocation2 + $0x50] sm:$0xff] %v363
  %s366 = scalar_lea.vmem %s0, 48
  %v367 = vld [vmem:[%s366] sm:$0xf]
  %v368 = vld [vmem:[%s366 + $0x4] sm:$0xf]
  %v369 = vld [vmem:[%s366 + $0x8] sm:$0xf]
  %v370 = vld [vmem:[%s366 + $0xc] sm:$0xf]
  %v371 = vld [vmem:[%s1] sm:$0xf]
  %v372 = vld [vmem:[%s1 + $0x4] sm:$0xf]
  %v373 = vld [vmem:[%s1 + $0x8] sm:$0xf]
  %v374 = vld [vmem:[%s1 + $0xc] sm:$0xf]
  %v375 = vld [vmem:[%s1 + $0x10] sm:$0xf]
  %v376 = vld [vmem:[%s1 + $0x14] sm:$0xf]
  %v377 = vld [vmem:[%s1 + $0x18] sm:$0xf]
  %v378 = vld [vmem:[%s1 + $0x1c] sm:$0xf]
  %v383 = vunpack.c.l.b16 %v367
  %v384 = vunpack.c.l.b16 %v368
  %v385 = vunpack.c.l.b16 %v369
  %v386 = vunpack.c.l.b16 %v370
  %v387 = vpack.c.b16 %v384, %v383
  %v388 = vpack.c.b16 %v386, %v385
  %v397 = vunpack.c.l.b16 %v371
  %v398 = vunpack.c.l.b16 %v372
  %v399 = vunpack.c.l.b16 %v373
  %v400 = vunpack.c.l.b16 %v374
  %v401 = vunpack.c.l.b16 %v375
  %v402 = vunpack.c.l.b16 %v376
  %v403 = vunpack.c.l.b16 %v377
  %v404 = vunpack.c.l.b16 %v378
  %v405 = vpack.c.b16 %v398, %v397
  %v406 = vpack.c.b16 %v400, %v399
  %v407 = vpack.c.b16 %v402, %v401
  %v408 = vpack.c.b16 %v404, %v403
  %v414 = vsel %vm70, %v387, 0
  %v417 = vsel %vm70, %v388, 0
  %419 = vmatprep.subr.bf16.mxu0 0
  %420 = vmatpush1.bf16.msra.mxu0 %v405
  %421 = vmatprep.subr.bf16.mxu0 0
  %422 = vmatpush1.bf16.msra.mxu0 %v406
  %423 = vmatprep.subr.bf16.mxu0 0
  %424 = vmatpush1.bf16.msra.mxu0 %v407
  %425 = vmatprep.subr.bf16.mxu0 0
  %426 = vmatpush1.bf16.msra.mxu0 %v408
  %427 = vmatprep.subr.bf16.mxu0 0
  %428 = vmatpush1.bf16.msra.mxu0 0
  %429 = vmatprep.subr.bf16.mxu0 0
  %430 = vmatpush1.bf16.msra.mxu0 0
  %431 = vmatprep.subr.bf16.mxu0 0
  %432 = vmatpush1.bf16.msra.mxu0 0
  %433 = vmatprep.subr.bf16.mxu0 0
  %434 = vmatpush1.bf16.msra.mxu0 0
  %435 = vmatprep.subr.bf16.mxu0 0
  %436 = vmatpush1.bf16.msra.mxu0 0
  %437 = vmatprep.subr.bf16.mxu0 0
  %438 = vmatpush1.bf16.msra.mxu0 0
  %439 = vmatprep.subr.bf16.mxu0 0
  %440 = vmatpush1.bf16.msra.mxu0 0
  %441 = vmatprep.subr.bf16.mxu0 0
  %442 = vmatpush1.bf16.msra.mxu0 0
  %443 = vmatprep.subr.bf16.mxu0 0
  %444 = vmatpush1.bf16.msra.mxu0 0
  %445 = vmatprep.subr.bf16.mxu0 0
  %446 = vmatpush1.bf16.msra.mxu0 0
  %447 = vmatprep.subr.bf16.mxu0 0
  %448 = vmatpush1.bf16.msra.mxu0 0
  %449 = vmatprep.subr.bf16.mxu0 0
  %450 = vmatpush1.bf16.msra.mxu0 0
  %451 = vmatprep.mubr.bf16.mxu0 0
  %452 = vmatmul.mubr.bf16.gmra.mrb[0].mxu0 %v414
  %v453 = vpop.f32.mrb[0].mxu0
  %v454 = vadd.f32 0.0, %v453
  %v455 = vpop.f32.mrb[0].mxu0
  %v456 = vpop.f32.mrb[0].mxu0
  %v457 = vadd.f32 0.0, %v456
  %v458 = vpop.f32.mrb[0].mxu0
  %459 = vmatprep.mubr.bf16.mxu0 0
  %460 = vmatmul.mubr.bf16.gmra.mrb[0].mxu0 %v417
  %v461 = vpop.f32.mrb[0].mxu0
  %v462 = vadd.f32 0.0, %v461
  %v463 = vpop.f32.mrb[0].mxu0
  %v464 = vpop.f32.mrb[0].mxu0
  %v465 = vadd.f32 0.0, %v464
  %v466 = vpop.f32.mrb[0].mxu0
  %467 = vdwg.mxu0
  %v468 = vmul.f32 %v454, 0.2
  %v469 = vmul.f32 %v457, 0.2
  %v470 = vmul.f32 %v462, 0.2
  %v471 = vmul.f32 %v465, 0.2
  %v472 = vmax.f32 %v454, %v468
  %v473 = vmax.f32 %v457, %v469
  %v474 = vmax.f32 %v462, %v470
  %v475 = vmax.f32 %v465, %v471
  %v476 = vpack.c.bf16 %v473, %v472
  %v477 = vpack.c.bf16 %v475, %v474
  %478 = vst [vmem:[#allocation2 + $0x18] sm:$0xff] %v476
  %479 = vst [vmem:[#allocation2 + $0x58] sm:$0xff] %v477
  %s480 = scalar_lea.vmem %s0, 64
  %v481 = vld [vmem:[%s480] sm:$0xf]
  %v482 = vld [vmem:[%s480 + $0x4] sm:$0xf]
  %v483 = vld [vmem:[%s480 + $0x8] sm:$0xf]
  %v484 = vld [vmem:[%s480 + $0xc] sm:$0xf]
  %v485 = vld [vmem:[%s1] sm:$0xf]
  %v486 = vld [vmem:[%s1 + $0x4] sm:$0xf]
  %v487 = vld [vmem:[%s1 + $0x8] sm:$0xf]
  %v488 = vld [vmem:[%s1 + $0xc] sm:$0xf]
  %v489 = vld [vmem:[%s1 + $0x10] sm:$0xf]
  %v490 = vld [vmem:[%s1 + $0x14] sm:$0xf]
  %v491 = vld [vmem:[%s1 + $0x18] sm:$0xf]
  %v492 = vld [vmem:[%s1 + $0x1c] sm:$0xf]
  %v497 = vunpack.c.l.b16 %v481
  %v498 = vunpack.c.l.b16 %v482
  %v499 = vunpack.c.l.b16 %v483
  %v500 = vunpack.c.l.b16 %v484
  %v501 = vpack.c.b16 %v498, %v497
  %v502 = vpack.c.b16 %v500, %v499
  %v511 = vunpack.c.l.b16 %v485
  %v512 = vunpack.c.l.b16 %v486
  %v513 = vunpack.c.l.b16 %v487
  %v514 = vunpack.c.l.b16 %v488
  %v515 = vunpack.c.l.b16 %v489
  %v516 = vunpack.c.l.b16 %v490
  %v517 = vunpack.c.l.b16 %v491
  %v518 = vunpack.c.l.b16 %v492
  %v519 = vpack.c.b16 %v512, %v511
  %v520 = vpack.c.b16 %v514, %v513
  %v521 = vpack.c.b16 %v516, %v515
  %v522 = vpack.c.b16 %v518, %v517
  %v528 = vsel %vm70, %v501, 0
  %v531 = vsel %vm70, %v502, 0
  %533 = vmatprep.subr.bf16.mxu0 0
  %534 = vmatpush1.bf16.msra.mxu0 %v519
  %535 = vmatprep.subr.bf16.mxu0 0
  %536 = vmatpush1.bf16.msra.mxu0 %v520
  %537 = vmatprep.subr.bf16.mxu0 0
  %538 = vmatpush1.bf16.msra.mxu0 %v521
  %539 = vmatprep.subr.bf16.mxu0 0
  %540 = vmatpush1.bf16.msra.mxu0 %v522
  %541 = vmatprep.subr.bf16.mxu0 0
  %542 = vmatpush1.bf16.msra.mxu0 0
  %543 = vmatprep.subr.bf16.mxu0 0
  %544 = vmatpush1.bf16.msra.mxu0 0
  %545 = vmatprep.subr.bf16.mxu0 0
  %546 = vmatpush1.bf16.msra.mxu0 0
  %547 = vmatprep.subr.bf16.mxu0 0
  %548 = vmatpush1.bf16.msra.mxu0 0
  %549 = vmatprep.subr.bf16.mxu0 0
  %550 = vmatpush1.bf16.msra.mxu0 0
  %551 = vmatprep.subr.bf16.mxu0 0
  %552 = vmatpush1.bf16.msra.mxu0 0
  %553 = vmatprep.subr.bf16.mxu0 0
  %554 = vmatpush1.bf16.msra.mxu0 0
  %555 = vmatprep.subr.bf16.mxu0 0
  %556 = vmatpush1.bf16.msra.mxu0 0
  %557 = vmatprep.subr.bf16.mxu0 0
  %558 = vmatpush1.bf16.msra.mxu0 0
  %559 = vmatprep.subr.bf16.mxu0 0
  %560 = vmatpush1.bf16.msra.mxu0 0
  %561 = vmatprep.subr.bf16.mxu0 0
  %562 = vmatpush1.bf16.msra.mxu0 0
  %563 = vmatprep.subr.bf16.mxu0 0
  %564 = vmatpush1.bf16.msra.mxu0 0
  %565 = vmatprep.mubr.bf16.mxu0 0
  %566 = vmatmul.mubr.bf16.gmra.mrb[0].mxu0 %v528
  %v567 = vpop.f32.mrb[0].mxu0
  %v568 = vadd.f32 0.0, %v567
  %v569 = vpop.f32.mrb[0].mxu0
  %v570 = vpop.f32.mrb[0].mxu0
  %v571 = vadd.f32 0.0, %v570
  %v572 = vpop.f32.mrb[0].mxu0
  %573 = vmatprep.mubr.bf16.mxu0 0
  %574 = vmatmul.mubr.bf16.gmra.mrb[0].mxu0 %v531
  %v575 = vpop.f32.mrb[0].mxu0
  %v576 = vadd.f32 0.0, %v575
  %v577 = vpop.f32.mrb[0].mxu0
  %v578 = vpop.f32.mrb[0].mxu0
  %v579 = vadd.f32 0.0, %v578
  %v580 = vpop.f32.mrb[0].mxu0
  %581 = vdwg.mxu0
  %v582 = vmul.f32 %v568, 0.2
  %v583 = vmul.f32 %v571, 0.2
  %v584 = vmul.f32 %v576, 0.2
  %v585 = vmul.f32 %v579, 0.2
  %v586 = vmax.f32 %v568, %v582
  %v587 = vmax.f32 %v571, %v583
  %v588 = vmax.f32 %v576, %v584
  %v589 = vmax.f32 %v579, %v585
  %v590 = vpack.c.bf16 %v587, %v586
  %v591 = vpack.c.bf16 %v589, %v588
  %592 = vst [vmem:[#allocation2 + $0x20] sm:$0xff] %v590
  %593 = vst [vmem:[#allocation2 + $0x60] sm:$0xff] %v591
  %s594 = scalar_lea.vmem %s0, 80
  %v595 = vld [vmem:[%s594] sm:$0xf]
  %v596 = vld [vmem:[%s594 + $0x4] sm:$0xf]
  %v597 = vld [vmem:[%s594 + $0x8] sm:$0xf]
  %v598 = vld [vmem:[%s594 + $0xc] sm:$0xf]
  %v599 = vld [vmem:[%s1] sm:$0xf]
  %v600 = vld [vmem:[%s1 + $0x4] sm:$0xf]
  %v601 = vld [vmem:[%s1 + $0x8] sm:$0xf]
  %v602 = vld [vmem:[%s1 + $0xc] sm:$0xf]
  %v603 = vld [vmem:[%s1 + $0x10] sm:$0xf]
  %v604 = vld [vmem:[%s1 + $0x14] sm:$0xf]
  %v605 = vld [vmem:[%s1 + $0x18] sm:$0xf]
  %v606 = vld [vmem:[%s1 + $0x1c] sm:$0xf]
  %v611 = vunpack.c.l.b16 %v595
  %v612 = vunpack.c.l.b16 %v596
  %v613 = vunpack.c.l.b16 %v597
  %v614 = vunpack.c.l.b16 %v598
  %v615 = vpack.c.b16 %v612, %v611
  %v616 = vpack.c.b16 %v614, %v613
  %v625 = vunpack.c.l.b16 %v599
  %v626 = vunpack.c.l.b16 %v600
  %v627 = vunpack.c.l.b16 %v601
  %v628 = vunpack.c.l.b16 %v602
  %v629 = vunpack.c.l.b16 %v603
  %v630 = vunpack.c.l.b16 %v604
  %v631 = vunpack.c.l.b16 %v605
  %v632 = vunpack.c.l.b16 %v606
  %v633 = vpack.c.b16 %v626, %v625
  %v634 = vpack.c.b16 %v628, %v627
  %v635 = vpack.c.b16 %v630, %v629
  %v636 = vpack.c.b16 %v632, %v631
  %v642 = vsel %vm70, %v615, 0
  %v645 = vsel %vm70, %v616, 0
  %647 = vmatprep.subr.bf16.mxu0 0
  %648 = vmatpush1.bf16.msra.mxu0 %v633
  %649 = vmatprep.subr.bf16.mxu0 0
  %650 = vmatpush1.bf16.msra.mxu0 %v634
  %651 = vmatprep.subr.bf16.mxu0 0
  %652 = vmatpush1.bf16.msra.mxu0 %v635
  %653 = vmatprep.subr.bf16.mxu0 0
  %654 = vmatpush1.bf16.msra.mxu0 %v636
  %655 = vmatprep.subr.bf16.mxu0 0
  %656 = vmatpush1.bf16.msra.mxu0 0
  %657 = vmatprep.subr.bf16.mxu0 0
  %658 = vmatpush1.bf16.msra.mxu0 0
  %659 = vmatprep.subr.bf16.mxu0 0
  %660 = vmatpush1.bf16.msra.mxu0 0
  %661 = vmatprep.subr.bf16.mxu0 0
  %662 = vmatpush1.bf16.msra.mxu0 0
  %663 = vmatprep.subr.bf16.mxu0 0
  %664 = vmatpush1.bf16.msra.mxu0 0
  %665 = vmatprep.subr.bf16.mxu0 0
  %666 = vmatpush1.bf16.msra.mxu0 0
  %667 = vmatprep.subr.bf16.mxu0 0
  %668 = vmatpush1.bf16.msra.mxu0 0
  %669 = vmatprep.subr.bf16.mxu0 0
  %670 = vmatpush1.bf16.msra.mxu0 0
  %671 = vmatprep.subr.bf16.mxu0 0
  %672 = vmatpush1.bf16.msra.mxu0 0
  %673 = vmatprep.subr.bf16.mxu0 0
  %674 = vmatpush1.bf16.msra.mxu0 0
  %675 = vmatprep.subr.bf16.mxu0 0
  %676 = vmatpush1.bf16.msra.mxu0 0
  %677 = vmatprep.subr.bf16.mxu0 0
  %678 = vmatpush1.bf16.msra.mxu0 0
  %679 = vmatprep.mubr.bf16.mxu0 0
  %680 = vmatmul.mubr.bf16.gmra.mrb[0].mxu0 %v642
  %v681 = vpop.f32.mrb[0].mxu0
  %v682 = vadd.f32 0.0, %v681
  %v683 = vpop.f32.mrb[0].mxu0
  %v684 = vpop.f32.mrb[0].mxu0
  %v685 = vadd.f32 0.0, %v684
  %v686 = vpop.f32.mrb[0].mxu0
  %687 = vmatprep.mubr.bf16.mxu0 0
  %688 = vmatmul.mubr.bf16.gmra.mrb[0].mxu0 %v645
  %v689 = vpop.f32.mrb[0].mxu0
  %v690 = vadd.f32 0.0, %v689
  %v691 = vpop.f32.mrb[0].mxu0
  %v692 = vpop.f32.mrb[0].mxu0
  %v693 = vadd.f32 0.0, %v692
  %v694 = vpop.f32.mrb[0].mxu0
  %695 = vdwg.mxu0
  %v696 = vmul.f32 %v682, 0.2
  %v697 = vmul.f32 %v685, 0.2
  %v698 = vmul.f32 %v690, 0.2
  %v699 = vmul.f32 %v693, 0.2
  %v700 = vmax.f32 %v682, %v696
  %v701 = vmax.f32 %v685, %v697
  %v702 = vmax.f32 %v690, %v698
  %v703 = vmax.f32 %v693, %v699
  %v704 = vpack.c.bf16 %v701, %v700
  %v705 = vpack.c.bf16 %v703, %v702
  %706 = vst [vmem:[#allocation2 + $0x28] sm:$0xff] %v704
  %707 = vst [vmem:[#allocation2 + $0x68] sm:$0xff] %v705
  %s708 = scalar_lea.vmem %s0, 96
  %v709 = vld [vmem:[%s708] sm:$0xf]
  %v710 = vld [vmem:[%s708 + $0x4] sm:$0xf]
  %v711 = vld [vmem:[%s708 + $0x8] sm:$0xf]
  %v712 = vld [vmem:[%s708 + $0xc] sm:$0xf]
  %v713 = vld [vmem:[%s1] sm:$0xf]
  %v714 = vld [vmem:[%s1 + $0x4] sm:$0xf]
  %v715 = vld [vmem:[%s1 + $0x8] sm:$0xf]
  %v716 = vld [vmem:[%s1 + $0xc] sm:$0xf]
  %v717 = vld [vmem:[%s1 + $0x10] sm:$0xf]
  %v718 = vld [vmem:[%s1 + $0x14] sm:$0xf]
  %v719 = vld [vmem:[%s1 + $0x18] sm:$0xf]
  %v720 = vld [vmem:[%s1 + $0x1c] sm:$0xf]
  %v725 = vunpack.c.l.b16 %v709
  %v726 = vunpack.c.l.b16 %v710
  %v727 = vunpack.c.l.b16 %v711
  %v728 = vunpack.c.l.b16 %v712
  %v729 = vpack.c.b16 %v726, %v725
  %v730 = vpack.c.b16 %v728, %v727
  %v739 = vunpack.c.l.b16 %v713
  %v740 = vunpack.c.l.b16 %v714
  %v741 = vunpack.c.l.b16 %v715
  %v742 = vunpack.c.l.b16 %v716
  %v743 = vunpack.c.l.b16 %v717
  %v744 = vunpack.c.l.b16 %v718
  %v745 = vunpack.c.l.b16 %v719
  %v746 = vunpack.c.l.b16 %v720
  %v747 = vpack.c.b16 %v740, %v739
  %v748 = vpack.c.b16 %v742, %v741
  %v749 = vpack.c.b16 %v744, %v743
  %v750 = vpack.c.b16 %v746, %v745
  %v756 = vsel %vm70, %v729, 0
  %v759 = vsel %vm70, %v730, 0
  %761 = vmatprep.subr.bf16.mxu0 0
  %762 = vmatpush1.bf16.msra.mxu0 %v747
  %763 = vmatprep.subr.bf16.mxu0 0
  %764 = vmatpush1.bf16.msra.mxu0 %v748
  %765 = vmatprep.subr.bf16.mxu0 0
  %766 = vmatpush1.bf16.msra.mxu0 %v749
  %767 = vmatprep.subr.bf16.mxu0 0
  %768 = vmatpush1.bf16.msra.mxu0 %v750
  %769 = vmatprep.subr.bf16.mxu0 0
  %770 = vmatpush1.bf16.msra.mxu0 0
  %771 = vmatprep.subr.bf16.mxu0 0
  %772 = vmatpush1.bf16.msra.mxu0 0
  %773 = vmatprep.subr.bf16.mxu0 0
  %774 = vmatpush1.bf16.msra.mxu0 0
  %775 = vmatprep.subr.bf16.mxu0 0
  %776 = vmatpush1.bf16.msra.mxu0 0
  %777 = vmatprep.subr.bf16.mxu0 0
  %778 = vmatpush1.bf16.msra.mxu0 0
  %779 = vmatprep.subr.bf16.mxu0 0
  %780 = vmatpush1.bf16.msra.mxu0 0
  %781 = vmatprep.subr.bf16.mxu0 0
  %782 = vmatpush1.bf16.msra.mxu0 0
  %783 = vmatprep.subr.bf16.mxu0 0
  %784 = vmatpush1.bf16.msra.mxu0 0
  %785 = vmatprep.subr.bf16.mxu0 0
  %786 = vmatpush1.bf16.msra.mxu0 0
  %787 = vmatprep.subr.bf16.mxu0 0
  %788 = vmatpush1.bf16.msra.mxu0 0
  %789 = vmatprep.subr.bf16.mxu0 0
  %790 = vmatpush1.bf16.msra.mxu0 0
  %791 = vmatprep.subr.bf16.mxu0 0
  %792 = vmatpush1.bf16.msra.mxu0 0
  %793 = vmatprep.mubr.bf16.mxu0 0
  %794 = vmatmul.mubr.bf16.gmra.mrb[0].mxu0 %v756
  %v795 = vpop.f32.mrb[0].mxu0
  %v796 = vadd.f32 0.0, %v795
  %v797 = vpop.f32.mrb[0].mxu0
  %v798 = vpop.f32.mrb[0].mxu0
  %v799 = vadd.f32 0.0, %v798
  %v800 = vpop.f32.mrb[0].mxu0
  %801 = vmatprep.mubr.bf16.mxu0 0
  %802 = vmatmul.mubr.bf16.gmra.mrb[0].mxu0 %v759
  %v803 = vpop.f32.mrb[0].mxu0
  %v804 = vadd.f32 0.0, %v803
  %v805 = vpop.f32.mrb[0].mxu0
  %v806 = vpop.f32.mrb[0].mxu0
  %v807 = vadd.f32 0.0, %v806
  %v808 = vpop.f32.mrb[0].mxu0
  %809 = vdwg.mxu0
  %v810 = vmul.f32 %v796, 0.2
  %v811 = vmul.f32 %v799, 0.2
  %v812 = vmul.f32 %v804, 0.2
  %v813 = vmul.f32 %v807, 0.2
  %v814 = vmax.f32 %v796, %v810
  %v815 = vmax.f32 %v799, %v811
  %v816 = vmax.f32 %v804, %v812
  %v817 = vmax.f32 %v807, %v813
  %v818 = vpack.c.bf16 %v815, %v814
  %v819 = vpack.c.bf16 %v817, %v816
  %820 = vst [vmem:[#allocation2 + $0x30] sm:$0xff] %v818
  %821 = vst [vmem:[#allocation2 + $0x70] sm:$0xff] %v819
  %s822 = scalar_lea.vmem %s0, 112
  %v823 = vld [vmem:[%s822] sm:$0xf]
  %v824 = vld [vmem:[%s822 + $0x4] sm:$0xf]
  %v825 = vld [vmem:[%s822 + $0x8] sm:$0xf]
  %v826 = vld [vmem:[%s822 + $0xc] sm:$0xf]
  %v827 = vld [vmem:[%s1] sm:$0xf]
  %v828 = vld [vmem:[%s1 + $0x4] sm:$0xf]
  %v829 = vld [vmem:[%s1 + $0x8] sm:$0xf]
  %v830 = vld [vmem:[%s1 + $0xc] sm:$0xf]
  %v831 = vld [vmem:[%s1 + $0x10] sm:$0xf]
  %v832 = vld [vmem:[%s1 + $0x14] sm:$0xf]
  %v833 = vld [vmem:[%s1 + $0x18] sm:$0xf]
  %v834 = vld [vmem:[%s1 + $0x1c] sm:$0xf]
  %v839 = vunpack.c.l.b16 %v823
  %v840 = vunpack.c.l.b16 %v824
  %v841 = vunpack.c.l.b16 %v825
  %v842 = vunpack.c.l.b16 %v826
  %v843 = vpack.c.b16 %v840, %v839
  %v844 = vpack.c.b16 %v842, %v841
  %v853 = vunpack.c.l.b16 %v827
  %v854 = vunpack.c.l.b16 %v828
  %v855 = vunpack.c.l.b16 %v829
  %v856 = vunpack.c.l.b16 %v830
  %v857 = vunpack.c.l.b16 %v831
  %v858 = vunpack.c.l.b16 %v832
  %v859 = vunpack.c.l.b16 %v833
  %v860 = vunpack.c.l.b16 %v834
  %v861 = vpack.c.b16 %v854, %v853
  %v862 = vpack.c.b16 %v856, %v855
  %v863 = vpack.c.b16 %v858, %v857
  %v864 = vpack.c.b16 %v860, %v859
  %v870 = vsel %vm70, %v843, 0
  %v873 = vsel %vm70, %v844, 0
  %875 = vmatprep.subr.bf16.mxu0 0
  %876 = vmatpush1.bf16.msra.mxu0 %v861
  %877 = vmatprep.subr.bf16.mxu0 0
  %878 = vmatpush1.bf16.msra.mxu0 %v862
  %879 = vmatprep.subr.bf16.mxu0 0
  %880 = vmatpush1.bf16.msra.mxu0 %v863
  %881 = vmatprep.subr.bf16.mxu0 0
  %882 = vmatpush1.bf16.msra.mxu0 %v864
  %883 = vmatprep.subr.bf16.mxu0 0
  %884 = vmatpush1.bf16.msra.mxu0 0
  %885 = vmatprep.subr.bf16.mxu0 0
  %886 = vmatpush1.bf16.msra.mxu0 0
  %887 = vmatprep.subr.bf16.mxu0 0
  %888 = vmatpush1.bf16.msra.mxu0 0
  %889 = vmatprep.subr.bf16.mxu0 0
  %890 = vmatpush1.bf16.msra.mxu0 0
  %891 = vmatprep.subr.bf16.mxu0 0
  %892 = vmatpush1.bf16.msra.mxu0 0
  %893 = vmatprep.subr.bf16.mxu0 0
  %894 = vmatpush1.bf16.msra.mxu0 0
  %895 = vmatprep.subr.bf16.mxu0 0
  %896 = vmatpush1.bf16.msra.mxu0 0
  %897 = vmatprep.subr.bf16.mxu0 0
  %898 = vmatpush1.bf16.msra.mxu0 0
  %899 = vmatprep.subr.bf16.mxu0 0
  %900 = vmatpush1.bf16.msra.mxu0 0
  %901 = vmatprep.subr.bf16.mxu0 0
  %902 = vmatpush1.bf16.msra.mxu0 0
  %903 = vmatprep.subr.bf16.mxu0 0
  %904 = vmatpush1.bf16.msra.mxu0 0
  %905 = vmatprep.subr.bf16.mxu0 0
  %906 = vmatpush1.bf16.msra.mxu0 0
  %907 = vmatprep.mubr.bf16.mxu0 0
  %908 = vmatmul.mubr.bf16.gmra.mrb[0].mxu0 %v870
  %v909 = vpop.f32.mrb[0].mxu0
  %v910 = vadd.f32 0.0, %v909
  %v911 = vpop.f32.mrb[0].mxu0
  %v912 = vpop.f32.mrb[0].mxu0
  %v913 = vadd.f32 0.0, %v912
  %v914 = vpop.f32.mrb[0].mxu0
  %915 = vmatprep.mubr.bf16.mxu0 0
  %916 = vmatmul.mubr.bf16.gmra.mrb[0].mxu0 %v873
  %v917 = vpop.f32.mrb[0].mxu0
  %v918 = vadd.f32 0.0, %v917
  %v919 = vpop.f32.mrb[0].mxu0
  %v920 = vpop.f32.mrb[0].mxu0
  %v921 = vadd.f32 0.0, %v920
  %v922 = vpop.f32.mrb[0].mxu0
  %923 = vdwg.mxu0
  %v924 = vmul.f32 %v910, 0.2
  %v925 = vmul.f32 %v913, 0.2
  %v926 = vmul.f32 %v918, 0.2
  %v927 = vmul.f32 %v921, 0.2
  %v928 = vmax.f32 %v910, %v924
  %v929 = vmax.f32 %v913, %v925
  %v930 = vmax.f32 %v918, %v926
  %v931 = vmax.f32 %v921, %v927
  %v932 = vpack.c.bf16 %v929, %v928
  %v933 = vpack.c.bf16 %v931, %v930
  %934 = vst [vmem:[#allocation2 + $0x38] sm:$0xff] %v932
  %935 = vst [vmem:[#allocation2 + $0x78] sm:$0xff] %v933
  %v936 = vld [vmem:[#allocation2] sm:$0xff]
  %v937 = vld [vmem:[#allocation2 + $0x8] sm:$0xff]
  %v938 = vld [vmem:[#allocation2 + $0x10] sm:$0xff]
  %v939 = vld [vmem:[#allocation2 + $0x18] sm:$0xff]
  %v940 = vld [vmem:[#allocation2 + $0x20] sm:$0xff]
  %v941 = vld [vmem:[#allocation2 + $0x28] sm:$0xff]
  %v942 = vld [vmem:[#allocation2 + $0x30] sm:$0xff]
  %v943 = vld [vmem:[#allocation2 + $0x38] sm:$0xff]
  %v944 = vld [vmem:[#allocation2 + $0x40] sm:$0xff]
  %v945 = vld [vmem:[#allocation2 + $0x48] sm:$0xff]
  %v946 = vld [vmem:[#allocation2 + $0x50] sm:$0xff]
  %v947 = vld [vmem:[#allocation2 + $0x58] sm:$0xff]
  %v948 = vld [vmem:[#allocation2 + $0x60] sm:$0xff]
  %v949 = vld [vmem:[#allocation2 + $0x68] sm:$0xff]
  %v950 = vld [vmem:[#allocation2 + $0x70] sm:$0xff]
  %v951 = vld [vmem:[#allocation2 + $0x78] sm:$0xff]
  %v952 = vld [vmem:[%s2] sm:$0xf]
  %v953 = vld [vmem:[%s2 + $0x4] sm:$0xf]
  %v954 = vld [vmem:[%s2 + $0x8] sm:$0xf]
  %v955 = vld [vmem:[%s2 + $0xc] sm:$0xf]
  %v956 = vld [vmem:[%s2 + $0x10] sm:$0xf]
  %v957 = vld [vmem:[%s2 + $0x14] sm:$0xf]
  %v958 = vld [vmem:[%s2 + $0x18] sm:$0xf]
  %v959 = vld [vmem:[%s2 + $0x1c] sm:$0xf]
  %v960 = vld [vmem:[%s2 + $0x20] sm:$0xf]
  %v961 = vld [vmem:[%s2 + $0x24] sm:$0xf]
  %v962 = vld [vmem:[%s2 + $0x28] sm:$0xf]
  %v963 = vld [vmem:[%s2 + $0x2c] sm:$0xf]
  %v964 = vld [vmem:[%s2 + $0x30] sm:$0xf]
  %v965 = vld [vmem:[%s2 + $0x34] sm:$0xf]
  %v966 = vld [vmem:[%s2 + $0x38] sm:$0xf]
  %v967 = vld [vmem:[%s2 + $0x3c] sm:$0xf]
  %v968 = vld [vmem:[%s2 + $0x40] sm:$0xf]
  %v969 = vld [vmem:[%s2 + $0x44] sm:$0xf]
  %v970 = vld [vmem:[%s2 + $0x48] sm:$0xf]
  %v971 = vld [vmem:[%s2 + $0x4c] sm:$0xf]
  %v972 = vld [vmem:[%s2 + $0x50] sm:$0xf]
  %v973 = vld [vmem:[%s2 + $0x54] sm:$0xf]
  %v974 = vld [vmem:[%s2 + $0x58] sm:$0xf]
  %v975 = vld [vmem:[%s2 + $0x5c] sm:$0xf]
  %v976 = vld [vmem:[%s2 + $0x60] sm:$0xf]
  %v977 = vld [vmem:[%s2 + $0x64] sm:$0xf]
  %v978 = vld [vmem:[%s2 + $0x68] sm:$0xf]
  %v979 = vld [vmem:[%s2 + $0x6c] sm:$0xf]
  %v980 = vld [vmem:[%s2 + $0x70] sm:$0xf]
  %v981 = vld [vmem:[%s2 + $0x74] sm:$0xf]
  %v982 = vld [vmem:[%s2 + $0x78] sm:$0xf]
  %v983 = vld [vmem:[%s2 + $0x7c] sm:$0xf]
  %v984 = vld [vmem:[%s2 + $0x80] sm:$0xf]
  %v985 = vld [vmem:[%s2 + $0x84] sm:$0xf]
  %v986 = vld [vmem:[%s2 + $0x88] sm:$0xf]
  %v987 = vld [vmem:[%s2 + $0x8c] sm:$0xf]
  %v988 = vld [vmem:[%s2 + $0x90] sm:$0xf]
  %v989 = vld [vmem:[%s2 + $0x94] sm:$0xf]
  %v990 = vld [vmem:[%s2 + $0x98] sm:$0xf]
  %v991 = vld [vmem:[%s2 + $0x9c] sm:$0xf]
  %v992 = vld [vmem:[%s2 + $0xa0] sm:$0xf]
  %v993 = vld [vmem:[%s2 + $0xa4] sm:$0xf]
  %v994 = vld [vmem:[%s2 + $0xa8] sm:$0xf]
  %v995 = vld [vmem:[%s2 + $0xac] sm:$0xf]
  %v996 = vld [vmem:[%s2 + $0xb0] sm:$0xf]
  %v997 = vld [vmem:[%s2 + $0xb4] sm:$0xf]
  %v998 = vld [vmem:[%s2 + $0xb8] sm:$0xf]
  %v999 = vld [vmem:[%s2 + $0xbc] sm:$0xf]
  %v1000 = vld [vmem:[%s2 + $0xc0] sm:$0xf]
  %v1001 = vld [vmem:[%s2 + $0xc4] sm:$0xf]
  %v1002 = vld [vmem:[%s2 + $0xc8] sm:$0xf]
  %v1003 = vld [vmem:[%s2 + $0xcc] sm:$0xf]
  %v1004 = vld [vmem:[%s2 + $0xd0] sm:$0xf]
  %v1005 = vld [vmem:[%s2 + $0xd4] sm:$0xf]
  %v1006 = vld [vmem:[%s2 + $0xd8] sm:$0xf]
  %v1007 = vld [vmem:[%s2 + $0xdc] sm:$0xf]
  %v1008 = vld [vmem:[%s2 + $0xe0] sm:$0xf]
  %v1009 = vld [vmem:[%s2 + $0xe4] sm:$0xf]
  %v1010 = vld [vmem:[%s2 + $0xe8] sm:$0xf]
  %v1011 = vld [vmem:[%s2 + $0xec] sm:$0xf]
  %v1012 = vld [vmem:[%s2 + $0xf0] sm:$0xf]
  %v1013 = vld [vmem:[%s2 + $0xf4] sm:$0xf]
  %v1014 = vld [vmem:[%s2 + $0xf8] sm:$0xf]
  %v1015 = vld [vmem:[%s2 + $0xfc] sm:$0xf]
  %v1016 = vld [vmem:[%s2 + $0x100] sm:$0xf]
  %v1017 = vld [vmem:[%s2 + $0x104] sm:$0xf]
  %v1018 = vld [vmem:[%s2 + $0x108] sm:$0xf]
  %v1019 = vld [vmem:[%s2 + $0x10c] sm:$0xf]
  %v1020 = vld [vmem:[%s2 + $0x110] sm:$0xf]
  %v1021 = vld [vmem:[%s2 + $0x114] sm:$0xf]
  %v1022 = vld [vmem:[%s2 + $0x118] sm:$0xf]
  %v1023 = vld [vmem:[%s2 + $0x11c] sm:$0xf]
  %v1024 = vld [vmem:[%s2 + $0x120] sm:$0xf]
  %v1025 = vld [vmem:[%s2 + $0x124] sm:$0xf]
  %v1026 = vld [vmem:[%s2 + $0x128] sm:$0xf]
  %v1027 = vld [vmem:[%s2 + $0x12c] sm:$0xf]
  %v1028 = vld [vmem:[%s2 + $0x130] sm:$0xf]
  %v1029 = vld [vmem:[%s2 + $0x134] sm:$0xf]
  %v1030 = vld [vmem:[%s2 + $0x138] sm:$0xf]
  %v1031 = vld [vmem:[%s2 + $0x13c] sm:$0xf]
  %v1032 = vld [vmem:[%s2 + $0x140] sm:$0xf]
  %v1033 = vld [vmem:[%s2 + $0x144] sm:$0xf]
  %v1034 = vld [vmem:[%s2 + $0x148] sm:$0xf]
  %v1035 = vld [vmem:[%s2 + $0x14c] sm:$0xf]
  %v1036 = vld [vmem:[%s2 + $0x150] sm:$0xf]
  %v1037 = vld [vmem:[%s2 + $0x154] sm:$0xf]
  %v1038 = vld [vmem:[%s2 + $0x158] sm:$0xf]
  %v1039 = vld [vmem:[%s2 + $0x15c] sm:$0xf]
  %v1040 = vld [vmem:[%s2 + $0x160] sm:$0xf]
  %v1041 = vld [vmem:[%s2 + $0x164] sm:$0xf]
  %v1042 = vld [vmem:[%s2 + $0x168] sm:$0xf]
  %v1043 = vld [vmem:[%s2 + $0x16c] sm:$0xf]
  %v1044 = vld [vmem:[%s2 + $0x170] sm:$0xf]
  %v1045 = vld [vmem:[%s2 + $0x174] sm:$0xf]
  %v1046 = vld [vmem:[%s2 + $0x178] sm:$0xf]
  %v1047 = vld [vmem:[%s2 + $0x17c] sm:$0xf]
  %v1048 = vld [vmem:[%s2 + $0x180] sm:$0xf]
  %v1049 = vld [vmem:[%s2 + $0x184] sm:$0xf]
  %v1050 = vld [vmem:[%s2 + $0x188] sm:$0xf]
  %v1051 = vld [vmem:[%s2 + $0x18c] sm:$0xf]
  %v1052 = vld [vmem:[%s2 + $0x190] sm:$0xf]
  %v1053 = vld [vmem:[%s2 + $0x194] sm:$0xf]
  %v1054 = vld [vmem:[%s2 + $0x198] sm:$0xf]
  %v1055 = vld [vmem:[%s2 + $0x19c] sm:$0xf]
  %v1056 = vld [vmem:[%s2 + $0x1a0] sm:$0xf]
  %v1057 = vld [vmem:[%s2 + $0x1a4] sm:$0xf]
  %v1058 = vld [vmem:[%s2 + $0x1a8] sm:$0xf]
  %v1059 = vld [vmem:[%s2 + $0x1ac] sm:$0xf]
  %v1060 = vld [vmem:[%s2 + $0x1b0] sm:$0xf]
  %v1061 = vld [vmem:[%s2 + $0x1b4] sm:$0xf]
  %v1062 = vld [vmem:[%s2 + $0x1b8] sm:$0xf]
  %v1063 = vld [vmem:[%s2 + $0x1bc] sm:$0xf]
  %v1064 = vld [vmem:[%s2 + $0x1c0] sm:$0xf]
  %v1065 = vld [vmem:[%s2 + $0x1c4] sm:$0xf]
  %v1066 = vld [vmem:[%s2 + $0x1c8] sm:$0xf]
  %v1067 = vld [vmem:[%s2 + $0x1cc] sm:$0xf]
  %v1068 = vld [vmem:[%s2 + $0x1d0] sm:$0xf]
  %v1069 = vld [vmem:[%s2 + $0x1d4] sm:$0xf]
  %v1070 = vld [vmem:[%s2 + $0x1d8] sm:$0xf]
  %v1071 = vld [vmem:[%s2 + $0x1dc] sm:$0xf]
  %v1072 = vld [vmem:[%s2 + $0x1e0] sm:$0xf]
  %v1073 = vld [vmem:[%s2 + $0x1e4] sm:$0xf]
  %v1074 = vld [vmem:[%s2 + $0x1e8] sm:$0xf]
  %v1075 = vld [vmem:[%s2 + $0x1ec] sm:$0xf]
  %v1076 = vld [vmem:[%s2 + $0x1f0] sm:$0xf]
  %v1077 = vld [vmem:[%s2 + $0x1f4] sm:$0xf]
  %v1078 = vld [vmem:[%s2 + $0x1f8] sm:$0xf]
  %v1079 = vld [vmem:[%s2 + $0x1fc] sm:$0xf]
  %v1208 = vunpack.c.l.b16 %v952
  %v1209 = vunpack.c.l.b16 %v953
  %v1210 = vunpack.c.l.b16 %v954
  %v1211 = vunpack.c.l.b16 %v955
  %v1212 = vunpack.c.l.b16 %v956
  %v1213 = vunpack.c.l.b16 %v957
  %v1214 = vunpack.c.l.b16 %v958
  %v1215 = vunpack.c.l.b16 %v959
  %v1216 = vunpack.c.l.b16 %v960
  %v1217 = vunpack.c.l.b16 %v961
  %v1218 = vunpack.c.l.b16 %v962
  %v1219 = vunpack.c.l.b16 %v963
  %v1220 = vunpack.c.l.b16 %v964
  %v1221 = vunpack.c.l.b16 %v965
  %v1222 = vunpack.c.l.b16 %v966
  %v1223 = vunpack.c.l.b16 %v967
  %v1224 = vunpack.c.l.b16 %v968
  %v1225 = vunpack.c.l.b16 %v969
  %v1226 = vunpack.c.l.b16 %v970
  %v1227 = vunpack.c.l.b16 %v971
  %v1228 = vunpack.c.l.b16 %v972
  %v1229 = vunpack.c.l.b16 %v973
  %v1230 = vunpack.c.l.b16 %v974
  %v1231 = vunpack.c.l.b16 %v975
  %v1232 = vunpack.c.l.b16 %v976
  %v1233 = vunpack.c.l.b16 %v977
  %v1234 = vunpack.c.l.b16 %v978
  %v1235 = vunpack.c.l.b16 %v979
  %v1236 = vunpack.c.l.b16 %v980
  %v1237 = vunpack.c.l.b16 %v981
  %v1238 = vunpack.c.l.b16 %v982
  %v1239 = vunpack.c.l.b16 %v983
  %v1240 = vunpack.c.l.b16 %v984
  %v1241 = vunpack.c.l.b16 %v985
  %v1242 = vunpack.c.l.b16 %v986
  %v1243 = vunpack.c.l.b16 %v987
  %v1244 = vunpack.c.l.b16 %v988
  %v1245 = vunpack.c.l.b16 %v989
  %v1246 = vunpack.c.l.b16 %v990
  %v1247 = vunpack.c.l.b16 %v991
  %v1248 = vunpack.c.l.b16 %v992
  %v1249 = vunpack.c.l.b16 %v993
  %v1250 = vunpack.c.l.b16 %v994
  %v1251 = vunpack.c.l.b16 %v995
  %v1252 = vunpack.c.l.b16 %v996
  %v1253 = vunpack.c.l.b16 %v997
  %v1254 = vunpack.c.l.b16 %v998
  %v1255 = vunpack.c.l.b16 %v999
  %v1256 = vunpack.c.l.b16 %v1000
  %v1257 = vunpack.c.l.b16 %v1001
  %v1258 = vunpack.c.l.b16 %v1002
  %v1259 = vunpack.c.l.b16 %v1003
  %v1260 = vunpack.c.l.b16 %v1004
  %v1261 = vunpack.c.l.b16 %v1005
  %v1262 = vunpack.c.l.b16 %v1006
  %v1263 = vunpack.c.l.b16 %v1007
  %v1264 = vunpack.c.l.b16 %v1008
  %v1265 = vunpack.c.l.b16 %v1009
  %v1266 = vunpack.c.l.b16 %v1010
  %v1267 = vunpack.c.l.b16 %v1011
  %v1268 = vunpack.c.l.b16 %v1012
  %v1269 = vunpack.c.l.b16 %v1013
  %v1270 = vunpack.c.l.b16 %v1014
  %v1271 = vunpack.c.l.b16 %v1015
  %v1272 = vunpack.c.l.b16 %v1016
  %v1273 = vunpack.c.l.b16 %v1017
  %v1274 = vunpack.c.l.b16 %v1018
  %v1275 = vunpack.c.l.b16 %v1019
  %v1276 = vunpack.c.l.b16 %v1020
  %v1277 = vunpack.c.l.b16 %v1021
  %v1278 = vunpack.c.l.b16 %v1022
  %v1279 = vunpack.c.l.b16 %v1023
  %v1280 = vunpack.c.l.b16 %v1024
  %v1281 = vunpack.c.l.b16 %v1025
  %v1282 = vunpack.c.l.b16 %v1026
  %v1283 = vunpack.c.l.b16 %v1027
  %v1284 = vunpack.c.l.b16 %v1028
  %v1285 = vunpack.c.l.b16 %v1029
  %v1286 = vunpack.c.l.b16 %v1030
  %v1287 = vunpack.c.l.b16 %v1031
  %v1288 = vunpack.c.l.b16 %v1032
  %v1289 = vunpack.c.l.b16 %v1033
  %v1290 = vunpack.c.l.b16 %v1034
  %v1291 = vunpack.c.l.b16 %v1035
  %v1292 = vunpack.c.l.b16 %v1036
  %v1293 = vunpack.c.l.b16 %v1037
  %v1294 = vunpack.c.l.b16 %v1038
  %v1295 = vunpack.c.l.b16 %v1039
  %v1296 = vunpack.c.l.b16 %v1040
  %v1297 = vunpack.c.l.b16 %v1041
  %v1298 = vunpack.c.l.b16 %v1042
  %v1299 = vunpack.c.l.b16 %v1043
  %v1300 = vunpack.c.l.b16 %v1044
  %v1301 = vunpack.c.l.b16 %v1045
  %v1302 = vunpack.c.l.b16 %v1046
  %v1303 = vunpack.c.l.b16 %v1047
  %v1304 = vunpack.c.l.b16 %v1048
  %v1305 = vunpack.c.l.b16 %v1049
  %v1306 = vunpack.c.l.b16 %v1050
  %v1307 = vunpack.c.l.b16 %v1051
  %v1308 = vunpack.c.l.b16 %v1052
  %v1309 = vunpack.c.l.b16 %v1053
  %v1310 = vunpack.c.l.b16 %v1054
  %v1311 = vunpack.c.l.b16 %v1055
  %v1312 = vunpack.c.l.b16 %v1056
  %v1313 = vunpack.c.l.b16 %v1057
  %v1314 = vunpack.c.l.b16 %v1058
  %v1315 = vunpack.c.l.b16 %v1059
  %v1316 = vunpack.c.l.b16 %v1060
  %v1317 = vunpack.c.l.b16 %v1061
  %v1318 = vunpack.c.l.b16 %v1062
  %v1319 = vunpack.c.l.b16 %v1063
  %v1320 = vunpack.c.l.b16 %v1064
  %v1321 = vunpack.c.l.b16 %v1065
  %v1322 = vunpack.c.l.b16 %v1066
  %v1323 = vunpack.c.l.b16 %v1067
  %v1324 = vunpack.c.l.b16 %v1068
  %v1325 = vunpack.c.l.b16 %v1069
  %v1326 = vunpack.c.l.b16 %v1070
  %v1327 = vunpack.c.l.b16 %v1071
  %v1328 = vunpack.c.l.b16 %v1072
  %v1329 = vunpack.c.l.b16 %v1073
  %v1330 = vunpack.c.l.b16 %v1074
  %v1331 = vunpack.c.l.b16 %v1075
  %v1332 = vunpack.c.l.b16 %v1076
  %v1333 = vunpack.c.l.b16 %v1077
  %v1334 = vunpack.c.l.b16 %v1078
  %v1335 = vunpack.c.l.b16 %v1079
  %v1336 = vpack.c.b16 %v1209, %v1208
  %v1337 = vpack.c.b16 %v1211, %v1210
  %v1338 = vpack.c.b16 %v1213, %v1212
  %v1339 = vpack.c.b16 %v1215, %v1214
  %v1340 = vpack.c.b16 %v1217, %v1216
  %v1341 = vpack.c.b16 %v1219, %v1218
  %v1342 = vpack.c.b16 %v1221, %v1220
  %v1343 = vpack.c.b16 %v1223, %v1222
  %v1344 = vpack.c.b16 %v1225, %v1224
  %v1345 = vpack.c.b16 %v1227, %v1226
  %v1346 = vpack.c.b16 %v1229, %v1228
  %v1347 = vpack.c.b16 %v1231, %v1230
  %v1348 = vpack.c.b16 %v1233, %v1232
  %v1349 = vpack.c.b16 %v1235, %v1234
  %v1350 = vpack.c.b16 %v1237, %v1236
  %v1351 = vpack.c.b16 %v1239, %v1238
  %v1352 = vpack.c.b16 %v1241, %v1240
  %v1353 = vpack.c.b16 %v1243, %v1242
  %v1354 = vpack.c.b16 %v1245, %v1244
  %v1355 = vpack.c.b16 %v1247, %v1246
  %v1356 = vpack.c.b16 %v1249, %v1248
  %v1357 = vpack.c.b16 %v1251, %v1250
  %v1358 = vpack.c.b16 %v1253, %v1252
  %v1359 = vpack.c.b16 %v1255, %v1254
  %v1360 = vpack.c.b16 %v1257, %v1256
  %v1361 = vpack.c.b16 %v1259, %v1258
  %v1362 = vpack.c.b16 %v1261, %v1260
  %v1363 = vpack.c.b16 %v1263, %v1262
  %v1364 = vpack.c.b16 %v1265, %v1264
  %v1365 = vpack.c.b16 %v1267, %v1266
  %v1366 = vpack.c.b16 %v1269, %v1268
  %v1367 = vpack.c.b16 %v1271, %v1270
  %v1368 = vpack.c.b16 %v1273, %v1272
  %v1369 = vpack.c.b16 %v1275, %v1274
  %v1370 = vpack.c.b16 %v1277, %v1276
  %v1371 = vpack.c.b16 %v1279, %v1278
  %v1372 = vpack.c.b16 %v1281, %v1280
  %v1373 = vpack.c.b16 %v1283, %v1282
  %v1374 = vpack.c.b16 %v1285, %v1284
  %v1375 = vpack.c.b16 %v1287, %v1286
  %v1376 = vpack.c.b16 %v1289, %v1288
  %v1377 = vpack.c.b16 %v1291, %v1290
  %v1378 = vpack.c.b16 %v1293, %v1292
  %v1379 = vpack.c.b16 %v1295, %v1294
  %v1380 = vpack.c.b16 %v1297, %v1296
  %v1381 = vpack.c.b16 %v1299, %v1298
  %v1382 = vpack.c.b16 %v1301, %v1300
  %v1383 = vpack.c.b16 %v1303, %v1302
  %v1384 = vpack.c.b16 %v1305, %v1304
  %v1385 = vpack.c.b16 %v1307, %v1306
  %v1386 = vpack.c.b16 %v1309, %v1308
  %v1387 = vpack.c.b16 %v1311, %v1310
  %v1388 = vpack.c.b16 %v1313, %v1312
  %v1389 = vpack.c.b16 %v1315, %v1314
  %v1390 = vpack.c.b16 %v1317, %v1316
  %v1391 = vpack.c.b16 %v1319, %v1318
  %v1392 = vpack.c.b16 %v1321, %v1320
  %v1393 = vpack.c.b16 %v1323, %v1322
  %v1394 = vpack.c.b16 %v1325, %v1324
  %v1395 = vpack.c.b16 %v1327, %v1326
  %v1396 = vpack.c.b16 %v1329, %v1328
  %v1397 = vpack.c.b16 %v1331, %v1330
  %v1398 = vpack.c.b16 %v1333, %v1332
  %v1399 = vpack.c.b16 %v1335, %v1334
  %1464 = vmatprep.subr.bf16.mxu0 0
  %1465 = vmatpush1.bf16.msra.mxu0 %v1336
  %1466 = vmatprep.subr.bf16.mxu0 0
  %1467 = vmatpush1.bf16.msra.mxu0 %v1337
  %1468 = vmatprep.subr.bf16.mxu0 0
  %1469 = vmatpush1.bf16.msra.mxu0 %v1338
  %1470 = vmatprep.subr.bf16.mxu0 0
  %1471 = vmatpush1.bf16.msra.mxu0 %v1339
  %1472 = vmatprep.subr.bf16.mxu0 0
  %1473 = vmatpush1.bf16.msra.mxu0 %v1340
  %1474 = vmatprep.subr.bf16.mxu0 0
  %1475 = vmatpush1.bf16.msra.mxu0 %v1341
  %1476 = vmatprep.subr.bf16.mxu0 0
  %1477 = vmatpush1.bf16.msra.mxu0 %v1342
  %1478 = vmatprep.subr.bf16.mxu0 0
  %1479 = vmatpush1.bf16.msra.mxu0 %v1343
  %1480 = vmatprep.subr.bf16.mxu0 0
  %1481 = vmatpush1.bf16.msra.mxu0 %v1344
  %1482 = vmatprep.subr.bf16.mxu0 0
  %1483 = vmatpush1.bf16.msra.mxu0 %v1345
  %1484 = vmatprep.subr.bf16.mxu0 0
  %1485 = vmatpush1.bf16.msra.mxu0 %v1346
  %1486 = vmatprep.subr.bf16.mxu0 0
  %1487 = vmatpush1.bf16.msra.mxu0 %v1347
  %1488 = vmatprep.subr.bf16.mxu0 0
  %1489 = vmatpush1.bf16.msra.mxu0 %v1348
  %1490 = vmatprep.subr.bf16.mxu0 0
  %1491 = vmatpush1.bf16.msra.mxu0 %v1349
  %1492 = vmatprep.subr.bf16.mxu0 0
  %1493 = vmatpush1.bf16.msra.mxu0 %v1350
  %1494 = vmatprep.subr.bf16.mxu0 0
  %1495 = vmatpush1.bf16.msra.mxu0 %v1351
  %1496 = vmatprep.mubr.bf16.mxu0 %v937
  %1497 = vmatmul.mubr.bf16.gmra.mrb[0].mxu0 %v936
  %v1498 = vpop.f32.mrb[0].mxu0
  %v1499 = vadd.f32 0.0, %v1498
  %v1500 = vpop.f32.mrb[0].mxu0
  %v1501 = vpop.f32.mrb[0].mxu0
  %v1502 = vadd.f32 0.0, %v1501
  %v1503 = vpop.f32.mrb[0].mxu0
  %1504 = vmatprep.mubr.bf16.mxu0 %v945
  %1505 = vmatmul.mubr.bf16.gmra.mrb[0].mxu0 %v944
  %v1506 = vpop.f32.mrb[0].mxu0
  %v1507 = vadd.f32 0.0, %v1506
  %v1508 = vpop.f32.mrb[0].mxu0
  %v1509 = vpop.f32.mrb[0].mxu0
  %v1510 = vadd.f32 0.0, %v1509
  %v1511 = vpop.f32.mrb[0].mxu0
  %1512 = vdwg.mxu0
  %1513 = vmatprep.subr.bf16.mxu0 0
  %1514 = vmatpush1.bf16.msra.mxu0 %v1352
  %1515 = vmatprep.subr.bf16.mxu0 0
  %1516 = vmatpush1.bf16.msra.mxu0 %v1353
  %1517 = vmatprep.subr.bf16.mxu0 0
  %1518 = vmatpush1.bf16.msra.mxu0 %v1354
  %1519 = vmatprep.subr.bf16.mxu0 0
  %1520 = vmatpush1.bf16.msra.mxu0 %v1355
  %1521 = vmatprep.subr.bf16.mxu0 0
  %1522 = vmatpush1.bf16.msra.mxu0 %v1356
  %1523 = vmatprep.subr.bf16.mxu0 0
  %1524 = vmatpush1.bf16.msra.mxu0 %v1357
  %1525 = vmatprep.subr.bf16.mxu0 0
  %1526 = vmatpush1.bf16.msra.mxu0 %v1358
  %1527 = vmatprep.subr.bf16.mxu0 0
  %1528 = vmatpush1.bf16.msra.mxu0 %v1359
  %1529 = vmatprep.subr.bf16.mxu0 0
  %1530 = vmatpush1.bf16.msra.mxu0 %v1360
  %1531 = vmatprep.subr.bf16.mxu0 0
  %1532 = vmatpush1.bf16.msra.mxu0 %v1361
  %1533 = vmatprep.subr.bf16.mxu0 0
  %1534 = vmatpush1.bf16.msra.mxu0 %v1362
  %1535 = vmatprep.subr.bf16.mxu0 0
  %1536 = vmatpush1.bf16.msra.mxu0 %v1363
  %1537 = vmatprep.subr.bf16.mxu0 0
  %1538 = vmatpush1.bf16.msra.mxu0 %v1364
  %1539 = vmatprep.subr.bf16.mxu0 0
  %1540 = vmatpush1.bf16.msra.mxu0 %v1365
  %1541 = vmatprep.subr.bf16.mxu0 0
  %1542 = vmatpush1.bf16.msra.mxu0 %v1366
  %1543 = vmatprep.subr.bf16.mxu0 0
  %1544 = vmatpush1.bf16.msra.mxu0 %v1367
  %1545 = vmatprep.mubr.bf16.mxu0 %v939
  %1546 = vmatmul.mubr.bf16.gmra.mrb[0].mxu0 %v938
  %v1547 = vpop.f32.mrb[0].mxu0
  %v1548 = vadd.f32 %v1499, %v1547
  %v1549 = vpop.f32.mrb[0].mxu0
  %v1550 = vpop.f32.mrb[0].mxu0
  %v1551 = vadd.f32 %v1502, %v1550
  %v1552 = vpop.f32.mrb[0].mxu0
  %1553 = vmatprep.mubr.bf16.mxu0 %v947
  %1554 = vmatmul.mubr.bf16.gmra.mrb[0].mxu0 %v946
  %v1555 = vpop.f32.mrb[0].mxu0
  %v1556 = vadd.f32 %v1507, %v1555
  %v1557 = vpop.f32.mrb[0].mxu0
  %v1558 = vpop.f32.mrb[0].mxu0
  %v1559 = vadd.f32 %v1510, %v1558
  %v1560 = vpop.f32.mrb[0].mxu0
  %1561 = vdwg.mxu0
  %1562 = vmatprep.subr.bf16.mxu0 0
  %1563 = vmatpush1.bf16.msra.mxu0 %v1368
  %1564 = vmatprep.subr.bf16.mxu0 0
  %1565 = vmatpush1.bf16.msra.mxu0 %v1369
  %1566 = vmatprep.subr.bf16.mxu0 0
  %1567 = vmatpush1.bf16.msra.mxu0 %v1370
  %1568 = vmatprep.subr.bf16.mxu0 0
  %1569 = vmatpush1.bf16.msra.mxu0 %v1371
  %1570 = vmatprep.subr.bf16.mxu0 0
  %1571 = vmatpush1.bf16.msra.mxu0 %v1372
  %1572 = vmatprep.subr.bf16.mxu0 0
  %1573 = vmatpush1.bf16.msra.mxu0 %v1373
  %1574 = vmatprep.subr.bf16.mxu0 0
  %1575 = vmatpush1.bf16.msra.mxu0 %v1374
  %1576 = vmatprep.subr.bf16.mxu0 0
  %1577 = vmatpush1.bf16.msra.mxu0 %v1375
  %1578 = vmatprep.subr.bf16.mxu0 0
  %1579 = vmatpush1.bf16.msra.mxu0 %v1376
  %1580 = vmatprep.subr.bf16.mxu0 0
  %1581 = vmatpush1.bf16.msra.mxu0 %v1377
  %1582 = vmatprep.subr.bf16.mxu0 0
  %1583 = vmatpush1.bf16.msra.mxu0 %v1378
  %1584 = vmatprep.subr.bf16.mxu0 0
  %1585 = vmatpush1.bf16.msra.mxu0 %v1379
  %1586 = vmatprep.subr.bf16.mxu0 0
  %1587 = vmatpush1.bf16.msra.mxu0 %v1380
  %1588 = vmatprep.subr.bf16.mxu0 0
  %1589 = vmatpush1.bf16.msra.mxu0 %v1381
  %1590 = vmatprep.subr.bf16.mxu0 0
  %1591 = vmatpush1.bf16.msra.mxu0 %v1382
  %1592 = vmatprep.subr.bf16.mxu0 0
  %1593 = vmatpush1.bf16.msra.mxu0 %v1383
  %1594 = vmatprep.mubr.bf16.mxu0 %v941
  %1595 = vmatmul.mubr.bf16.gmra.mrb[0].mxu0 %v940
  %v1596 = vpop.f32.mrb[0].mxu0
  %v1597 = vadd.f32 %v1548, %v1596
  %v1598 = vpop.f32.mrb[0].mxu0
  %v1599 = vpop.f32.mrb[0].mxu0
  %v1600 = vadd.f32 %v1551, %v1599
  %v1601 = vpop.f32.mrb[0].mxu0
  %1602 = vmatprep.mubr.bf16.mxu0 %v949
  %1603 = vmatmul.mubr.bf16.gmra.mrb[0].mxu0 %v948
  %v1604 = vpop.f32.mrb[0].mxu0
  %v1605 = vadd.f32 %v1556, %v1604
  %v1606 = vpop.f32.mrb[0].mxu0
  %v1607 = vpop.f32.mrb[0].mxu0
  %v1608 = vadd.f32 %v1559, %v1607
  %v1609 = vpop.f32.mrb[0].mxu0
  %1610 = vdwg.mxu0
  %1611 = vmatprep.subr.bf16.mxu0 0
  %1612 = vmatpush1.bf16.msra.mxu0 %v1384
  %1613 = vmatprep.subr.bf16.mxu0 0
  %1614 = vmatpush1.bf16.msra.mxu0 %v1385
  %1615 = vmatprep.subr.bf16.mxu0 0
  %1616 = vmatpush1.bf16.msra.mxu0 %v1386
  %1617 = vmatprep.subr.bf16.mxu0 0
  %1618 = vmatpush1.bf16.msra.mxu0 %v1387
  %1619 = vmatprep.subr.bf16.mxu0 0
  %1620 = vmatpush1.bf16.msra.mxu0 %v1388
  %1621 = vmatprep.subr.bf16.mxu0 0
  %1622 = vmatpush1.bf16.msra.mxu0 %v1389
  %1623 = vmatprep.subr.bf16.mxu0 0
  %1624 = vmatpush1.bf16.msra.mxu0 %v1390
  %1625 = vmatprep.subr.bf16.mxu0 0
  %1626 = vmatpush1.bf16.msra.mxu0 %v1391
  %1627 = vmatprep.subr.bf16.mxu0 0
  %1628 = vmatpush1.bf16.msra.mxu0 %v1392
  %1629 = vmatprep.subr.bf16.mxu0 0
  %1630 = vmatpush1.bf16.msra.mxu0 %v1393
  %1631 = vmatprep.subr.bf16.mxu0 0
  %1632 = vmatpush1.bf16.msra.mxu0 %v1394
  %1633 = vmatprep.subr.bf16.mxu0 0
  %1634 = vmatpush1.bf16.msra.mxu0 %v1395
  %1635 = vmatprep.subr.bf16.mxu0 0
  %1636 = vmatpush1.bf16.msra.mxu0 %v1396
  %1637 = vmatprep.subr.bf16.mxu0 0
  %1638 = vmatpush1.bf16.msra.mxu0 %v1397
  %1639 = vmatprep.subr.bf16.mxu0 0
  %1640 = vmatpush1.bf16.msra.mxu0 %v1398
  %1641 = vmatprep.subr.bf16.mxu0 0
  %1642 = vmatpush1.bf16.msra.mxu0 %v1399
  %1643 = vmatprep.mubr.bf16.mxu0 %v943
  %1644 = vmatmul.mubr.bf16.gmra.mrb[0].mxu0 %v942
  %v1645 = vpop.f32.mrb[0].mxu0
  %v1646 = vadd.f32 %v1597, %v1645
  %v1647 = vpop.f32.mrb[0].mxu0
  %v1648 = vpop.f32.mrb[0].mxu0
  %v1649 = vadd.f32 %v1600, %v1648
  %v1650 = vpop.f32.mrb[0].mxu0
  %1651 = vmatprep.mubr.bf16.mxu0 %v951
  %1652 = vmatmul.mubr.bf16.gmra.mrb[0].mxu0 %v950
  %v1653 = vpop.f32.mrb[0].mxu0
  %v1654 = vadd.f32 %v1605, %v1653
  %v1655 = vpop.f32.mrb[0].mxu0
  %v1656 = vpop.f32.mrb[0].mxu0
  %v1657 = vadd.f32 %v1608, %v1656
  %v1658 = vpop.f32.mrb[0].mxu0
  %1659 = vdwg.mxu0
  %v1660 = vadd.f32 %v1646, %v1649
  %v1661 = vadd.f32 %v1660, %v1654
  %v1662 = vadd.f32 %v1661, %v1657
  %v1663 = vrot.slane %v1662, 4
  %v1664 = vadd.f32 %v1662, %v1663
  %v1665 = vrot.slane %v1664, 2
  %v1666 = vadd.f32 %v1664, %v1665
  %v1667 = vrot.slane %v1666, 1
  %v1668 = vadd.f32 %v1666, %v1667
  %v1669 = vmul.f32 %v1646, %v1646
  %v1670 = vmul.f32 %v1649, %v1649
  %v1671 = vmul.f32 %v1654, %v1654
  %v1672 = vmul.f32 %v1657, %v1657
  %v1673 = vadd.f32 %v1669, %v1670
  %v1674 = vadd.f32 %v1673, %v1671
  %v1675 = vadd.f32 %v1674, %v1672
  %v1676 = vrot.slane %v1675, 4
  %v1677 = vadd.f32 %v1675, %v1676
  %v1678 = vrot.slane %v1677, 2
  %v1679 = vadd.f32 %v1677, %v1678
  %v1680 = vrot.slane %v1679, 1
  %v1681 = vadd.f32 %v1679, %v1680
  %v1682 = vmul.f32 %v1668, 0.03125
  %v1683 = vmul.f32 %v1681, 0.03125
  %v1684 = vmul.f32 %v1682, %v1682
  %v1685 = vsub.f32 %v1683, %v1684
  %v1686 = vsub.f32 %v1646, %v1682
  %v1687 = vsub.f32 %v1649, %v1682
  %v1688 = vsub.f32 %v1654, %v1682
  %v1689 = vsub.f32 %v1657, %v1682
  %v1690 = vld [vmem:[%s4] sm:$0x1]
  %v1691 = vadd.f32 %v1685, 1e-05
  %v1692 = vrsqrt.pop %v1691
  %v1693 = vmul.f32 %v1690, %v1692
  %v1695 = vlaneseq
  %v1696 = vshrl.u32 %v1695, 7
  %v1697 = vsub.s32 0, %v1696
  %v1698 = vrot.slane %v1693, %v1697
  %v1700 = vmul.f32 %v1686, %v1698
  %v1701 = vmul.f32 %v1687, %v1698
  %v1702 = vmul.f32 %v1688, %v1698
  %v1703 = vmul.f32 %v1689, %v1698
  %v1704 = vld [vmem:[%s5] sm:$0x1]
  %v1706 = vlaneseq
  %v1707 = vshrl.u32 %v1706, 7
  %v1708 = vsub.s32 0, %v1707
  %v1709 = vrot.slane %v1704, %v1708
  %v1711 = vadd.f32 %v1700, %v1709
  %v1712 = vadd.f32 %v1701, %v1709
  %v1713 = vadd.f32 %v1702, %v1709
  %v1714 = vadd.f32 %v1703, %v1709
  %v1715 = vmul.f32 %v1711, 0.2
  %v1716 = vmul.f32 %v1712, 0.2
  %v1717 = vmul.f32 %v1713, 0.2
  %v1718 = vmul.f32 %v1714, 0.2
  %v1719 = vmax.f32 %v1711, %v1715
  %v1720 = vmax.f32 %v1712, %v1716
  %v1721 = vmax.f32 %v1713, %v1717
  %v1722 = vmax.f32 %v1714, %v1718
  %v1723 = vld [vmem:[%s3] sm:$0xff]
  %v1724 = vld [vmem:[%s3 + $0x8] sm:$0xff]
  %v1725 = vmul.f32 %v1719, %v1723
  %v1726 = vmul.f32 %v1720, %v1724
  %v1727 = vmul.f32 %v1721, %v1723
  %v1728 = vmul.f32 %v1722, %v1724
  %1729 = vadd.xlane.f32.xlu0 %v1725
  %v1730 = vpop.xlane.xlu0 %1729
  %1731 = vadd.xlane.f32.xlu0 %v1726
  %v1732 = vpop.xlane.xlu0 %1731
  %1733 = vadd.xlane.f32.xlu0 %v1727
  %v1734 = vpop.xlane.xlu0 %1733
  %1735 = vadd.xlane.f32.xlu0 %v1728
  %v1736 = vpop.xlane.xlu0 %1735
  %v1737 = vadd.f32 %v1730, %v1732
  %v1738 = vrot.slane %v1737, 4
  %v1739 = vadd.f32 %v1737, %v1738
  %v1740 = vrot.slane %v1739, 2
  %v1741 = vadd.f32 %v1739, %v1740
  %v1742 = vrot.slane %v1741, 1
  %v1743 = vadd.f32 %v1741, %v1742
  %v1744 = vadd.f32 %v1734, %v1736
  %v1745 = vrot.slane %v1744, 4
  %v1746 = vadd.f32 %v1744, %v1745
  %v1747 = vrot.slane %v1746, 2
  %v1748 = vadd.f32 %v1746, %v1747
  %v1749 = vrot.slane %v1748, 1
  %v1750 = vadd.f32 %v1748, %v1749
  %vm1753 = vcmask 1041409
  %v1754 = vsel %vm1753, %v1750, %v1743
  %1756 = vst [vmem:[%s6] sm:$0x3] %v1754
  // Predicated region
  $region26: #{pure_conv_classifier16.1} parent=0 // pred_check
    _
  $region27: #{pure_conv_classifier16.1} parent=0 // pred_check_branch
    %1758 = sbr.rel (0) target = $region29
  $region28: #{pure_conv_classifier16.1} parent=0 // pred_region
    _
  $region29: #{pure_conv_classifier16.1} parent=0 // pred_fallthru
    _
  // Predicated region
  $region30: #{pure_conv_classifier16.1} parent=0 // pred_check
    _
  $region31: #{pure_conv_classifier16.1} parent=0 // pred_check_branch
    %1760 = sbr.rel (0) target = $region33
  $region32: #{pure_conv_classifier16.1} parent=0 // pred_region
    _
  $region33: #{pure_conv_classifier16.1} parent=0 // pred_fallthru
    _

</llo_original>
